<compile_context>
chip_gen: v6e
topology: v6e:2x2x1
jax: 0.10.0
libtpu: 0.0.40
codegen_flags: <defaults>
</compile_context>

<pallas_src>
import functools

import jax
import jax.numpy as jnp
from jax.experimental import pallas as pl
from jax.experimental.pallas import tpu as pltpu


def _round_up(x, m):
    return (x + m - 1) // m * m


# ----------------------------------------------------------------------------
# Kernel
# ----------------------------------------------------------------------------
# Weight slab (bf16, 6 blocks of (W, W) rows):
#   block 0: A2   block-diag attn2.T over T segments   (enc_flat -> z2_flat)
#   block 1: A1   attn1.T tiled across T segments      (carry    -> z1_flat)
#   block 2: W3E  attn3 "expand" (score repeated E x)  (x        -> s_exp)
#   block 3: FLD  E-scaled fold                        (beta*enc -> ctx lanes)
#   block 4: WG   [w_hh.T ; 0 ; outer(twc, w_ih)]      (carry+ctx-> gates)
#   block 5: WFC  fc2(fc1(.)) folded affine            (carry+ctx-> out)
# Vector slab (f32, 8 rows of W lanes):
#   0: tiled (attn1_b + attn2_b)   1: score pad mask (-1e30 past T*E)
#   2: twy*w_ih (y gate row)       3: gate bias b_ih+b_hh+tilde_b*w_ih
#   4: folded fc bias              5-7: zero padding rows
def decoder_kernel(enc_ref, y_ref, w_ref, v_ref, out_ref, *, T, D, W, unroll):
    bf16 = jnp.bfloat16
    f32 = jnp.float32
    TB = enc_ref.shape[0]

    # Hoisted weight blocks (each a (W, W) bf16 VMEM tile, loaded once).
    A2 = w_ref[0 * W:1 * W, :]
    A1 = w_ref[1 * W:2 * W, :]
    W3E = w_ref[2 * W:3 * W, :]
    FLD = w_ref[3 * W:4 * W, :]
    WG = w_ref[4 * W:5 * W, :]
    WFC = w_ref[5 * W:6 * W, :]

    # Hoisted vector rows (JAX does not CSE these inside the unrolled loop).
    zbias = v_ref[0:1, :]
    smask = v_ref[1:2, :]
    ygrow = v_ref[2:3, :]
    gbias = v_ref[3:4, :]
    fcbias = v_ref[4:5, :]

    enc = enc_ref[...]                         # (TB, W) f32, lanes = t*E + e
    y = y_ref[...]                             # (TB, W) f32, y_t at lane t
    enc_bf = enc.astype(bf16)

    zero_tail = jnp.zeros((TB, W - 2 * D), f32)
    carry = jnp.zeros((TB, W), f32)            # [h | c | 0 ...], f32

    # Loop-invariant attn2 path: one dense matmul on the block-diagonal slab.
    z2 = jnp.dot(enc_bf, A2, preferred_element_type=f32) + zbias

    def attention(c):
        # attn1([h|c]) tiled across the T segments: one matmul, dense lanes.
        z1 = jnp.dot(c.astype(bf16), A1, preferred_element_type=f32)
        x = jnp.tanh(z1 + z2)                                  # ONE full-width tanh
        # attn3 score expanded to every lane of its segment (bias dropped:
        # softmax is shift invariant); padded lanes get -1e30 from smask.
        s = jnp.dot(x.astype(bf16), W3E, preferred_element_type=f32) + smask
        e = jnp.exp(s - jnp.max(s, axis=1, keepdims=True))
        beta = e * pl.reciprocal(jnp.sum(e, axis=1, keepdims=True), approx=True)
        # context (the E-fold over-count of the denominator is folded into FLD),
        # placed directly at carry lanes [2D, 2D+E).
        return jnp.dot((beta * enc).astype(bf16), FLD, preferred_element_type=f32)

    def lstm_step(c, ctx, ygate):
        # ONE fused gate matmul over [h | c | ctx]; tilde() is folded into the
        # pre-activation (y_t row + ctx rows + bias) at pack time.
        gates = (jnp.dot((c + ctx).astype(bf16), WG, preferred_element_type=f32)
                 + ygate + gbias)                              # [i | f | g | o | 0]
        S = jax.nn.sigmoid(gates)                              # one full-vreg sigmoid
        G = jnp.tanh(gates)                                    # one full-vreg tanh
        c_new = S[:, D:2 * D] * c[:, D:2 * D] + S[:, 0:D] * G[:, 2 * D:3 * D]
        h_new = S[:, 3 * D:4 * D] * jnp.tanh(c_new)
        return jnp.concatenate([h_new, c_new, zero_tail], axis=1)

    if unroll:
        # Short T / modest batch tile: fully unrolled, LLO-visible.
        for t in range(T - 1):
            carry = lstm_step(carry, attention(carry), y[:, t:t + 1] * ygrow)
    else:
        # Long T: rolled loop; y-gate rows precomputed once so the body does a
        # cheap dynamic SUBLANE index instead of a dynamic lane extract.
        ysteps = y[:, 0:T, None] * ygrow[None, :, :]           # (TB, T, W)

        def body(t, c):
            yg = jax.lax.dynamic_index_in_dim(ysteps, t, axis=1, keepdims=False)
            return lstm_step(c, attention(c), yg)

        carry = jax.lax.fori_loop(0, T - 1, body, carry)

    ctx = attention(carry)                    # final attention (t = T-1)
    # fc2(fc1([h | ctx])) folded into one affine map on the carry; lane-dense
    # (TB, W) store, wrapper slices to out_feats.
    out_ref[...] = (jnp.dot((carry + ctx).astype(bf16), WFC,
                            preferred_element_type=f32) + fcbias)


# ----------------------------------------------------------------------------
# Parameter packing (one-time at model-load time in real use)
# ----------------------------------------------------------------------------
def pack_params(params, E, D, T, out_feats):
    f32 = jnp.float32
    TE = T * E
    # One common lane width for every 2-D tensor in the kernel.
    # TODO(synk): for very large T*E the block-diagonal attention slabs grow as
    # (T*E)^2; a chunked attention lane-space would be needed there.
    W = max(_round_up(TE, 128), _round_up(4 * D, 128),
            _round_up(2 * D + E, 128), 128)

    a1 = jnp.asarray(params["attn1_w"], f32)          # (E, 2D)
    a1b = jnp.asarray(params["attn1_b"], f32)
    a2 = jnp.asarray(params["attn2_w"], f32)          # (E, E)
    a2b = jnp.asarray(params["attn2_b"], f32)
    a3 = jnp.asarray(params["attn3_w"], f32)[0]       # (E,)
    tw = jnp.asarray(params["tilde_w"], f32)[0]       # (E+1,)
    tb = jnp.asarray(params["tilde_b"], f32)[0]
    twy, twc = tw[0], tw[1:]
    wih = jnp.asarray(params["w_ih"], f32)[:, 0]      # (4D,)
    whh = jnp.asarray(params["w_hh"], f32)            # (4D, D)
    bih = jnp.asarray(params["b_ih"], f32)
    bhh = jnp.asarray(params["b_hh"], f32)
    fc1w = jnp.asarray(params["fc1_w"], f32)          # (D, D+E)
    fc1b = jnp.asarray(params["fc1_b"], f32)
    fc2w = jnp.asarray(params["fc2_w"], f32)          # (out, D)
    fc2b = jnp.asarray(params["fc2_b"], f32)

    def pad_to(m, rows, cols, row_off=0, col_off=0):
        return jnp.pad(m, ((row_off, rows - row_off - m.shape[0]),
                           (col_off, cols - col_off - m.shape[1])))

    eye_t = jnp.eye(T, dtype=f32)
    a2bd = pad_to(jnp.kron(eye_t, a2.T), W, W)                       # block 0
    a1t = pad_to(jnp.tile(a1.T, (1, T)), W, W)                       # block 1
    w3e = pad_to(jnp.kron(eye_t, jnp.tile(a3[:, None], (1, E))), W, W)  # block 2
    fold = pad_to(jnp.kron(jnp.ones((T, 1), f32),
                           float(E) * jnp.eye(E, dtype=f32)),
                  W, W, col_off=2 * D)                               # block 3
    wg_core = jnp.concatenate(
        [whh.T, jnp.zeros((D, 4 * D), f32), twc[:, None] * wih[None, :]], axis=0)
    wg = pad_to(wg_core, W, W)                                       # block 4
    fc = fc1w.T @ fc2w.T                                             # (D+E, out)
    wfc_core = jnp.concatenate(
        [fc[0:D], jnp.zeros((D, out_feats), f32), fc[D:D + E]], axis=0)
    wfc = pad_to(wfc_core, W, W)                                     # block 5

    w_slab = jnp.concatenate([a2bd, a1t, w3e, fold, wg, wfc],
                             axis=0).astype(jnp.bfloat16)

    def pad_vec(v):
        v = jnp.asarray(v, f32).reshape(-1)
        return jnp.pad(v, (0, W - v.shape[0]))

    v_slab = jnp.stack([
        pad_vec(jnp.tile(a1b + a2b, T)),                   # 0: fused z-bias
        jnp.where(jnp.arange(W) < TE, 0.0, -1e30).astype(f32),  # 1: score mask
        pad_vec(twy * wih),                                # 2: y gate row
        pad_vec(bih + bhh + tb * wih),                     # 3: gate bias
        pad_vec(fc1b @ fc2w.T + fc2b),                     # 4: folded fc bias
        jnp.zeros((W,), f32), jnp.zeros((W,), f32), jnp.zeros((W,), f32),
    ], axis=0)
    return w_slab, v_slab, W


# ----------------------------------------------------------------------------
# Wrapper
# ----------------------------------------------------------------------------
def decoder_forward(params, input_encoded, y_seq, *, block_b=None):
    B, T, E = input_encoded.shape
    D = params["w_hh"].shape[1]
    out_feats = params["fc2_w"].shape[0]
    # TODO(synk): the torch batch_size==1 branch references an undefined
    # attribute (self.decode_hidden_size); only the batch>1 softmax path is
    # implemented here.

    # NOTE: in a real model pack_params() is done once at load time.
    w_slab, v_slab, W = pack_params(params, E, D, T, out_feats)

    if block_b is None:
        # Fat batch tile (MXU M dim); never sub-8.  On v7x pass an explicit
        # block_b = B_pad // (2*k) so the parallel grid splits across both TCs.
        block_b = min(_round_up(B, 8), 128)
    assert block_b % 8 == 0
    B_pad = _round_up(B, block_b)
    grid = (B_pad // block_b,)

    enc_flat = input_encoded.astype(jnp.float32).reshape(B, T * E)
    enc_flat = jnp.pad(enc_flat, ((0, B_pad - B), (0, W - T * E)))
    y_pad = jnp.pad(y_seq.astype(jnp.float32), ((0, B_pad - B), (0, W - T)))

    kernel = functools.partial(
        decoder_kernel, T=T, D=D, W=W,
        # Full unroll only when both T and the batch tile keep vreg pressure low.
        unroll=(T <= 16 and block_b <= 64))

    out = pl.pallas_call(
        kernel,
        out_shape=jax.ShapeDtypeStruct((B_pad, W), jnp.float32),
        grid=grid,
        in_specs=[
            pl.BlockSpec((block_b, W), lambda b: (b, 0)),
            pl.BlockSpec((block_b, W), lambda b: (b, 0)),
            pl.BlockSpec(w_slab.shape, lambda b: (0, 0)),   # weights: fetched once
            pl.BlockSpec(v_slab.shape, lambda b: (0, 0)),
        ],
        out_specs=pl.BlockSpec((block_b, W), lambda b: (b, 0)),
        compiler_params=pltpu.CompilerParams(
            dimension_semantics=("parallel",),
            vmem_limit_bytes=32 * 1024 * 1024),
    )(enc_flat, y_pad, w_slab, v_slab)
    return out[:B, :out_feats]


# ----------------------------------------------------------------------------
# Deterministic parameter init (PyTorch-style U(-1/sqrt(fan_in), 1/sqrt(fan_in)))
# ----------------------------------------------------------------------------
def init_params(key, E, D, out_feats):
    ks = jax.random.split(key, 10)

    def lin(k, out_f, in_f):
        kw, kb = jax.random.split(k)
        bound = 1.0 / float(in_f) ** 0.5
        w = jax.random.uniform(kw, (out_f, in_f), jnp.float32, -bound, bound)
        b = jax.random.uniform(kb, (out_f,), jnp.float32, -bound, bound)
        return w, b

    p = {}
    p["attn1_w"], p["attn1_b"] = lin(ks[0], E, 2 * D)
    p["attn2_w"], p["attn2_b"] = lin(ks[1], E, E)
    p["attn3_w"], p["attn3_b"] = lin(ks[2], 1, E)
    p["tilde_w"], p["tilde_b"] = lin(ks[3], 1, E + 1)
    p["fc1_w"], p["fc1_b"] = lin(ks[4], D, D + E)
    p["fc2_w"], p["fc2_b"] = lin(ks[5], out_feats, D)
    bound = 1.0 / float(D) ** 0.5
    p["w_ih"] = jax.random.uniform(ks[6], (4 * D, 1), jnp.float32, -bound, bound)
    p["w_hh"] = jax.random.uniform(ks[7], (4 * D, D), jnp.float32, -bound, bound)
    p["b_ih"] = jax.random.uniform(ks[8], (4 * D,), jnp.float32, -bound, bound)
    p["b_hh"] = jax.random.uniform(ks[9], (4 * D,), jnp.float32, -bound, bound)
    return p


# ----------------------------------------------------------------------------
# Pure-JAX reference (mirrors the torch forward 1:1, batch_size > 1 path)
# ----------------------------------------------------------------------------
def reference_forward(params, enc, y_seq):
    B, T, E = enc.shape
    D = params["w_hh"].shape[1]
    linear = lambda x, w, b: x @ w.T + b
    hidden = jnp.zeros((B, D), jnp.float32)
    cell = jnp.zeros((B, D), jnp.float32)
    context = jnp.zeros((B, E), jnp.float32)
    for t in range(T):
        hrep = jnp.broadcast_to(hidden[:, None, :], (B, T, D))
        crep = jnp.broadcast_to(cell[:, None, :], (B, T, D))
        x = jnp.concatenate([hrep, crep], axis=2)
        z1 = linear(x, params["attn1_w"], params["attn1_b"])
        z2 = linear(enc, params["attn2_w"], params["attn2_b"])
        z3 = linear(jnp.tanh(z1 + z2), params["attn3_w"], params["attn3_b"])
        beta = jax.nn.softmax(z3.reshape(B, T), axis=1)
        context = jnp.einsum("bt,bte->be", beta, enc)
        if t < T - 1:
            yc = jnp.concatenate([y_seq[:, t][:, None], context], axis=1)
            y_tilde = linear(yc, params["tilde_w"], params["tilde_b"])
            gates = (linear(y_tilde, params["w_ih"], params["b_ih"])
                     + linear(hidden, params["w_hh"], params["b_hh"]))
            i = jax.nn.sigmoid(gates[:, :D])
            f = jax.nn.sigmoid(gates[:, D:2 * D])
            g = jnp.tanh(gates[:, 2 * D:3 * D])
            o = jax.nn.sigmoid(gates[:, 3 * D:])
            cell = f * cell + i * g
            hidden = o * jnp.tanh(cell)
    h1 = linear(jnp.concatenate([hidden, context], axis=1),
                params["fc1_w"], params["fc1_b"])
    return linear(h1, params["fc2_w"], params["fc2_b"])


# ----------------------------------------------------------------------------
if __name__ == "__main__":
    B, T, E, D, OUT = 2, 8, 16, 32, 2

    key = jax.random.PRNGKey(0)
    k_enc, k_y, k_par = jax.random.split(key, 3)
    input_encoded = jax.random.normal(k_enc, (B, T, E), jnp.float32)
    y_seq = jax.random.normal(k_y, (B, T), jnp.float32)
    params = init_params(k_par, E, D, OUT)

    out = jax.block_until_ready(decoder_forward(params, input_encoded, y_seq))
    ref = jax.block_until_ready(reference_forward(params, input_encoded, y_seq))

    # Tolerance accounts for bf16 MXU operands (f32 accumulation), the folded
    # fc1*fc2 affine map, and the hardware approximate reciprocal in softmax.
    if not jnp.allclose(out, ref, rtol=3e-2, atol=3e-2):
        raise AssertionError(f"mismatch:\nkernel={out}\nref={ref}")

    print("KERNEL_OK")
</pallas_src>

<mosaic_0001>
module attributes {stable_mosaic.version = 11 : i64} {
  func.func @decoder_kernel(%arg0: i32, %arg1: memref<8x128xf32, #tpu.memory_space<vmem>>, %arg2: memref<8x128xf32, #tpu.memory_space<vmem>>, %arg3: memref<768x128xbf16, #tpu.memory_space<vmem>>, %arg4: memref<8x128xf32, #tpu.memory_space<vmem>>, %arg5: memref<8x128xf32, #tpu.memory_space<vmem>>) attributes {dimension_semantics = [#tpu.dimension_semantics<parallel>], iteration_bounds = array<i64: 1>, scalar_prefetch = 0 : i64, scratch_operands = 0 : i64, tpu.core_type = #tpu.core_type<tc>, window_params = [{transform_indices = @transform_0, window_bounds = array<i64: 8, 128>}, {transform_indices = @transform_1, window_bounds = array<i64: 8, 128>}, {pipeline_mode = #tpu.pipeline_mode<synchronous>, transform_indices = @transform_2, window_bounds = array<i64: 768, 128>}, {pipeline_mode = #tpu.pipeline_mode<synchronous>, transform_indices = @transform_3, window_bounds = array<i64: 8, 128>}, {transform_indices = @transform_4, window_bounds = array<i64: 8, 128>}]} {
    %c0 = arith.constant 0 : index
    %c0_0 = arith.constant 0 : index
    %0 = vector.load %arg3[%c0, %c0_0] : memref<768x128xbf16, #tpu.memory_space<vmem>>, vector<128x128xbf16>
    %c128 = arith.constant 128 : index
    %c0_1 = arith.constant 0 : index
    %1 = vector.load %arg3[%c128, %c0_1] : memref<768x128xbf16, #tpu.memory_space<vmem>>, vector<128x128xbf16>
    %c256 = arith.constant 256 : index
    %c0_2 = arith.constant 0 : index
    %2 = vector.load %arg3[%c256, %c0_2] : memref<768x128xbf16, #tpu.memory_space<vmem>>, vector<128x128xbf16>
    %c384 = arith.constant 384 : index
    %c0_3 = arith.constant 0 : index
    %3 = vector.load %arg3[%c384, %c0_3] : memref<768x128xbf16, #tpu.memory_space<vmem>>, vector<128x128xbf16>
    %c512 = arith.constant 512 : index
    %c0_4 = arith.constant 0 : index
    %4 = vector.load %arg3[%c512, %c0_4] : memref<768x128xbf16, #tpu.memory_space<vmem>>, vector<128x128xbf16>
    %c640 = arith.constant 640 : index
    %c0_5 = arith.constant 0 : index
    %5 = vector.load %arg3[%c640, %c0_5] : memref<768x128xbf16, #tpu.memory_space<vmem>>, vector<128x128xbf16>
    %c0_6 = arith.constant 0 : index
    %c0_7 = arith.constant 0 : index
    %6 = vector.load %arg4[%c0_6, %c0_7] : memref<8x128xf32, #tpu.memory_space<vmem>>, vector<1x128xf32>
    %c1 = arith.constant 1 : index
    %c0_8 = arith.constant 0 : index
    %7 = vector.load %arg4[%c1, %c0_8] : memref<8x128xf32, #tpu.memory_space<vmem>>, vector<1x128xf32>
    %c2 = arith.constant 2 : index
    %c0_9 = arith.constant 0 : index
    %8 = vector.load %arg4[%c2, %c0_9] : memref<8x128xf32, #tpu.memory_space<vmem>>, vector<1x128xf32>
    %c3 = arith.constant 3 : index
    %c0_10 = arith.constant 0 : index
    %9 = vector.load %arg4[%c3, %c0_10] : memref<8x128xf32, #tpu.memory_space<vmem>>, vector<1x128xf32>
    %c4 = arith.constant 4 : index
    %c0_11 = arith.constant 0 : index
    %10 = vector.load %arg4[%c4, %c0_11] : memref<8x128xf32, #tpu.memory_space<vmem>>, vector<1x128xf32>
    %c0_12 = arith.constant 0 : index
    %c0_13 = arith.constant 0 : index
    %11 = vector.load %arg1[%c0_12, %c0_13] : memref<8x128xf32, #tpu.memory_space<vmem>>, vector<8x128xf32>
    %c0_14 = arith.constant 0 : index
    %c0_15 = arith.constant 0 : index
    %12 = vector.load %arg2[%c0_14, %c0_15] : memref<8x128xf32, #tpu.memory_space<vmem>>, vector<8x128xf32>
    %13 = arith.truncf %11 : vector<8x128xf32> to vector<8x128xbf16>
    %cst = arith.constant 0.000000e+00 : f32
    %14 = vector.broadcast %cst : f32 to vector<8x64xf32>
    %cst_16 = arith.constant 0.000000e+00 : f32
    %15 = vector.broadcast %cst_16 : f32 to vector<8x128xf32>
    %cst_17 = arith.constant dense<0.000000e+00> : vector<8x128xf32>
    %16 = tpu.matmul %13, %0, %cst_17 {dimension_numbers = #tpu.dot_dimension_numbers<[1], [0], [0], [1], [0, 0, 1, 1], [], []>} : vector<8x128xbf16>, vector<128x128xbf16>, vector<8x128xf32> -> vector<8x128xf32>
    %17 = vector.broadcast %6 : vector<1x128xf32> to vector<8x128xf32>
    %18 = arith.addf %16, %17 : vector<8x128xf32>
    %19 = arith.truncf %15 : vector<8x128xf32> to vector<8x128xbf16>
    %cst_18 = arith.constant dense<0.000000e+00> : vector<8x128xf32>
    %20 = tpu.matmul %19, %1, %cst_18 {dimension_numbers = #tpu.dot_dimension_numbers<[1], [0], [0], [1], [0, 0, 1, 1], [], []>} : vector<8x128xbf16>, vector<128x128xbf16>, vector<8x128xf32> -> vector<8x128xf32>
    %21 = arith.addf %20, %18 : vector<8x128xf32>
    %22 = math.tanh %21 : vector<8x128xf32>
    %23 = arith.truncf %22 : vector<8x128xf32> to vector<8x128xbf16>
    %cst_19 = arith.constant dense<0.000000e+00> : vector<8x128xf32>
    %24 = tpu.matmul %23, %2, %cst_19 {dimension_numbers = #tpu.dot_dimension_numbers<[1], [0], [0], [1], [0, 0, 1, 1], [], []>} : vector<8x128xbf16>, vector<128x128xbf16>, vector<8x128xf32> -> vector<8x128xf32>
    %25 = vector.broadcast %7 : vector<1x128xf32> to vector<8x128xf32>
    %26 = arith.addf %24, %25 : vector<8x128xf32>
    %cst_20 = arith.constant dense<0xFF800000> : vector<8xf32>
    %27 = vector.multi_reduction <maximumf>, %26, %cst_20 [1] : vector<8x128xf32> to vector<8xf32>
    %28 = vector.shape_cast %27 : vector<8xf32> to vector<8x1xf32>
    %29 = vector.broadcast %28 : vector<8x1xf32> to vector<8x128xf32>
    %30 = arith.subf %26, %29 : vector<8x128xf32>
    %31 = math.exp %30 : vector<8x128xf32>
    %cst_21 = arith.constant dense<0.000000e+00> : vector<8xf32>
    %32 = vector.multi_reduction <add>, %31, %cst_21 [1] : vector<8x128xf32> to vector<8xf32>
    %33 = vector.shape_cast %32 : vector<8xf32> to vector<8x1xf32>
    %34 = tpu.reciprocal %33 {approx = true} : vector<8x1xf32> -> vector<8x1xf32>
    %35 = vector.broadcast %34 : vector<8x1xf32> to vector<8x128xf32>
    %36 = arith.mulf %31, %35 : vector<8x128xf32>
    %37 = arith.mulf %36, %11 : vector<8x128xf32>
    %38 = arith.truncf %37 : vector<8x128xf32> to vector<8x128xbf16>
    %cst_22 = arith.constant dense<0.000000e+00> : vector<8x128xf32>
    %39 = tpu.matmul %38, %3, %cst_22 {dimension_numbers = #tpu.dot_dimension_numbers<[1], [0], [0], [1], [0, 0, 1, 1], [], []>} : vector<8x128xbf16>, vector<128x128xbf16>, vector<8x128xf32> -> vector<8x128xf32>
    %40 = vector.extract_strided_slice %12 {offsets = [0, 0], sizes = [8, 1], strides = [1, 1]} : vector<8x128xf32> to vector<8x1xf32>
    %41 = vector.broadcast %40 : vector<8x1xf32> to vector<8x128xf32>
    %42 = vector.broadcast %8 : vector<1x128xf32> to vector<8x128xf32>
    %43 = arith.mulf %41, %42 : vector<8x128xf32>
    %44 = arith.addf %15, %39 : vector<8x128xf32>
    %45 = arith.truncf %44 : vector<8x128xf32> to vector<8x128xbf16>
    %cst_23 = arith.constant dense<0.000000e+00> : vector<8x128xf32>
    %46 = tpu.matmul %45, %4, %cst_23 {dimension_numbers = #tpu.dot_dimension_numbers<[1], [0], [0], [1], [0, 0, 1, 1], [], []>} : vector<8x128xbf16>, vector<128x128xbf16>, vector<8x128xf32> -> vector<8x128xf32>
    %47 = arith.addf %46, %43 : vector<8x128xf32>
    %48 = vector.broadcast %9 : vector<1x128xf32> to vector<8x128xf32>
    %49 = arith.addf %47, %48 : vector<8x128xf32>
    %50 = arith.negf %49 : vector<8x128xf32>
    %51 = math.exp %50 : vector<8x128xf32>
    %cst_24 = arith.constant 1.000000e+00 : f32
    %52 = vector.broadcast %cst_24 : f32 to vector<8x128xf32>
    %53 = arith.addf %52, %51 : vector<8x128xf32>
    %54 = arith.divf %52, %53 : vector<8x128xf32>
    %55 = math.tanh %49 : vector<8x128xf32>
    %56 = vector.extract_strided_slice %54 {offsets = [0, 32], sizes = [8, 32], strides = [1, 1]} : vector<8x128xf32> to vector<8x32xf32>
    %57 = vector.extract_strided_slice %15 {offsets = [0, 32], sizes = [8, 32], strides = [1, 1]} : vector<8x128xf32> to vector<8x32xf32>
    %58 = arith.mulf %56, %57 : vector<8x32xf32>
    %59 = vector.extract_strided_slice %54 {offsets = [0, 0], sizes = [8, 32], strides = [1, 1]} : vector<8x128xf32> to vector<8x32xf32>
    %60 = vector.extract_strided_slice %55 {offsets = [0, 64], sizes = [8, 32], strides = [1, 1]} : vector<8x128xf32> to vector<8x32xf32>
    %61 = arith.mulf %59, %60 : vector<8x32xf32>
    %62 = arith.addf %58, %61 : vector<8x32xf32>
    %63 = vector.extract_strided_slice %54 {offsets = [0, 96], sizes = [8, 32], strides = [1, 1]} : vector<8x128xf32> to vector<8x32xf32>
    %64 = math.tanh %62 : vector<8x32xf32>
    %65 = arith.mulf %63, %64 : vector<8x32xf32>
    %66 = tpu.concatenate %65, %62, %14 in 1 : vector<8x32xf32>, vector<8x32xf32>, vector<8x64xf32> -> vector<8x128xf32>
    %67 = arith.truncf %66 : vector<8x128xf32> to vector<8x128xbf16>
    %cst_25 = arith.constant dense<0.000000e+00> : vector<8x128xf32>
    %68 = tpu.matmul %67, %1, %cst_25 {dimension_numbers = #tpu.dot_dimension_numbers<[1], [0], [0], [1], [0, 0, 1, 1], [], []>} : vector<8x128xbf16>, vector<128x128xbf16>, vector<8x128xf32> -> vector<8x128xf32>
    %69 = arith.addf %68, %18 : vector<8x128xf32>
    %70 = math.tanh %69 : vector<8x128xf32>
    %71 = arith.truncf %70 : vector<8x128xf32> to vector<8x128xbf16>
    %cst_26 = arith.constant dense<0.000000e+00> : vector<8x128xf32>
    %72 = tpu.matmul %71, %2, %cst_26 {dimension_numbers = #tpu.dot_dimension_numbers<[1], [0], [0], [1], [0, 0, 1, 1], [], []>} : vector<8x128xbf16>, vector<128x128xbf16>, vector<8x128xf32> -> vector<8x128xf32>
    %73 = vector.broadcast %7 : vector<1x128xf32> to vector<8x128xf32>
    %74 = arith.addf %72, %73 : vector<8x128xf32>
    %cst_27 = arith.constant dense<0xFF800000> : vector<8xf32>
    %75 = vector.multi_reduction <maximumf>, %74, %cst_27 [1] : vector<8x128xf32> to vector<8xf32>
    %76 = vector.shape_cast %75 : vector<8xf32> to vector<8x1xf32>
    %77 = vector.broadcast %76 : vector<8x1xf32> to vector<8x128xf32>
    %78 = arith.subf %74, %77 : vector<8x128xf32>
    %79 = math.exp %78 : vector<8x128xf32>
    %cst_28 = arith.constant dense<0.000000e+00> : vector<8xf32>
    %80 = vector.multi_reduction <add>, %79, %cst_28 [1] : vector<8x128xf32> to vector<8xf32>
    %81 = vector.shape_cast %80 : vector<8xf32> to vector<8x1xf32>
    %82 = tpu.reciprocal %81 {approx = true} : vector<8x1xf32> -> vector<8x1xf32>
    %83 = vector.broadcast %82 : vector<8x1xf32> to vector<8x128xf32>
    %84 = arith.mulf %79, %83 : vector<8x128xf32>
    %85 = arith.mulf %84, %11 : vector<8x128xf32>
    %86 = arith.truncf %85 : vector<8x128xf32> to vector<8x128xbf16>
    %cst_29 = arith.constant dense<0.000000e+00> : vector<8x128xf32>
    %87 = tpu.matmul %86, %3, %cst_29 {dimension_numbers = #tpu.dot_dimension_numbers<[1], [0], [0], [1], [0, 0, 1, 1], [], []>} : vector<8x128xbf16>, vector<128x128xbf16>, vector<8x128xf32> -> vector<8x128xf32>
    %88 = vector.extract_strided_slice %12 {offsets = [0, 1], sizes = [8, 1], strides = [1, 1]} : vector<8x128xf32> to vector<8x1xf32>
    %89 = vector.broadcast %88 : vector<8x1xf32> to vector<8x128xf32>
    %90 = vector.broadcast %8 : vector<1x128xf32> to vector<8x128xf32>
    %91 = arith.mulf %89, %90 : vector<8x128xf32>
    %92 = arith.addf %66, %87 : vector<8x128xf32>
    %93 = arith.truncf %92 : vector<8x128xf32> to vector<8x128xbf16>
    %cst_30 = arith.constant dense<0.000000e+00> : vector<8x128xf32>
    %94 = tpu.matmul %93, %4, %cst_30 {dimension_numbers = #tpu.dot_dimension_numbers<[1], [0], [0], [1], [0, 0, 1, 1], [], []>} : vector<8x128xbf16>, vector<128x128xbf16>, vector<8x128xf32> -> vector<8x128xf32>
    %95 = arith.addf %94, %91 : vector<8x128xf32>
    %96 = vector.broadcast %9 : vector<1x128xf32> to vector<8x128xf32>
    %97 = arith.addf %95, %96 : vector<8x128xf32>
    %98 = arith.negf %97 : vector<8x128xf32>
    %99 = math.exp %98 : vector<8x128xf32>
    %cst_31 = arith.constant 1.000000e+00 : f32
    %100 = vector.broadcast %cst_31 : f32 to vector<8x128xf32>
    %101 = arith.addf %100, %99 : vector<8x128xf32>
    %102 = arith.divf %100, %101 : vector<8x128xf32>
    %103 = math.tanh %97 : vector<8x128xf32>
    %104 = vector.extract_strided_slice %102 {offsets = [0, 32], sizes = [8, 32], strides = [1, 1]} : vector<8x128xf32> to vector<8x32xf32>
    %105 = vector.extract_strided_slice %66 {offsets = [0, 32], sizes = [8, 32], strides = [1, 1]} : vector<8x128xf32> to vector<8x32xf32>
    %106 = arith.mulf %104, %105 : vector<8x32xf32>
    %107 = vector.extract_strided_slice %102 {offsets = [0, 0], sizes = [8, 32], strides = [1, 1]} : vector<8x128xf32> to vector<8x32xf32>
    %108 = vector.extract_strided_slice %103 {offsets = [0, 64], sizes = [8, 32], strides = [1, 1]} : vector<8x128xf32> to vector<8x32xf32>
    %109 = arith.mulf %107, %108 : vector<8x32xf32>
    %110 = arith.addf %106, %109 : vector<8x32xf32>
    %111 = vector.extract_strided_slice %102 {offsets = [0, 96], sizes = [8, 32], strides = [1, 1]} : vector<8x128xf32> to vector<8x32xf32>
    %112 = math.tanh %110 : vector<8x32xf32>
    %113 = arith.mulf %111, %112 : vector<8x32xf32>
    %114 = tpu.concatenate %113, %110, %14 in 1 : vector<8x32xf32>, vector<8x32xf32>, vector<8x64xf32> -> vector<8x128xf32>
    %115 = arith.truncf %114 : vector<8x128xf32> to vector<8x128xbf16>
    %cst_32 = arith.constant dense<0.000000e+00> : vector<8x128xf32>
    %116 = tpu.matmul %115, %1, %cst_32 {dimension_numbers = #tpu.dot_dimension_numbers<[1], [0], [0], [1], [0, 0, 1, 1], [], []>} : vector<8x128xbf16>, vector<128x128xbf16>, vector<8x128xf32> -> vector<8x128xf32>
    %117 = arith.addf %116, %18 : vector<8x128xf32>
    %118 = math.tanh %117 : vector<8x128xf32>
    %119 = arith.truncf %118 : vector<8x128xf32> to vector<8x128xbf16>
    %cst_33 = arith.constant dense<0.000000e+00> : vector<8x128xf32>
    %120 = tpu.matmul %119, %2, %cst_33 {dimension_numbers = #tpu.dot_dimension_numbers<[1], [0], [0], [1], [0, 0, 1, 1], [], []>} : vector<8x128xbf16>, vector<128x128xbf16>, vector<8x128xf32> -> vector<8x128xf32>
    %121 = vector.broadcast %7 : vector<1x128xf32> to vector<8x128xf32>
    %122 = arith.addf %120, %121 : vector<8x128xf32>
    %cst_34 = arith.constant dense<0xFF800000> : vector<8xf32>
    %123 = vector.multi_reduction <maximumf>, %122, %cst_34 [1] : vector<8x128xf32> to vector<8xf32>
    %124 = vector.shape_cast %123 : vector<8xf32> to vector<8x1xf32>
    %125 = vector.broadcast %124 : vector<8x1xf32> to vector<8x128xf32>
    %126 = arith.subf %122, %125 : vector<8x128xf32>
    %127 = math.exp %126 : vector<8x128xf32>
    %cst_35 = arith.constant dense<0.000000e+00> : vector<8xf32>
    %128 = vector.multi_reduction <add>, %127, %cst_35 [1] : vector<8x128xf32> to vector<8xf32>
    %129 = vector.shape_cast %128 : vector<8xf32> to vector<8x1xf32>
    %130 = tpu.reciprocal %129 {approx = true} : vector<8x1xf32> -> vector<8x1xf32>
    %131 = vector.broadcast %130 : vector<8x1xf32> to vector<8x128xf32>
    %132 = arith.mulf %127, %131 : vector<8x128xf32>
    %133 = arith.mulf %132, %11 : vector<8x128xf32>
    %134 = arith.truncf %133 : vector<8x128xf32> to vector<8x128xbf16>
    %cst_36 = arith.constant dense<0.000000e+00> : vector<8x128xf32>
    %135 = tpu.matmul %134, %3, %cst_36 {dimension_numbers = #tpu.dot_dimension_numbers<[1], [0], [0], [1], [0, 0, 1, 1], [], []>} : vector<8x128xbf16>, vector<128x128xbf16>, vector<8x128xf32> -> vector<8x128xf32>
    %136 = vector.extract_strided_slice %12 {offsets = [0, 2], sizes = [8, 1], strides = [1, 1]} : vector<8x128xf32> to vector<8x1xf32>
    %137 = vector.broadcast %136 : vector<8x1xf32> to vector<8x128xf32>
    %138 = vector.broadcast %8 : vector<1x128xf32> to vector<8x128xf32>
    %139 = arith.mulf %137, %138 : vector<8x128xf32>
    %140 = arith.addf %114, %135 : vector<8x128xf32>
    %141 = arith.truncf %140 : vector<8x128xf32> to vector<8x128xbf16>
    %cst_37 = arith.constant dense<0.000000e+00> : vector<8x128xf32>
    %142 = tpu.matmul %141, %4, %cst_37 {dimension_numbers = #tpu.dot_dimension_numbers<[1], [0], [0], [1], [0, 0, 1, 1], [], []>} : vector<8x128xbf16>, vector<128x128xbf16>, vector<8x128xf32> -> vector<8x128xf32>
    %143 = arith.addf %142, %139 : vector<8x128xf32>
    %144 = vector.broadcast %9 : vector<1x128xf32> to vector<8x128xf32>
    %145 = arith.addf %143, %144 : vector<8x128xf32>
    %146 = arith.negf %145 : vector<8x128xf32>
    %147 = math.exp %146 : vector<8x128xf32>
    %cst_38 = arith.constant 1.000000e+00 : f32
    %148 = vector.broadcast %cst_38 : f32 to vector<8x128xf32>
    %149 = arith.addf %148, %147 : vector<8x128xf32>
    %150 = arith.divf %148, %149 : vector<8x128xf32>
    %151 = math.tanh %145 : vector<8x128xf32>
    %152 = vector.extract_strided_slice %150 {offsets = [0, 32], sizes = [8, 32], strides = [1, 1]} : vector<8x128xf32> to vector<8x32xf32>
    %153 = vector.extract_strided_slice %114 {offsets = [0, 32], sizes = [8, 32], strides = [1, 1]} : vector<8x128xf32> to vector<8x32xf32>
    %154 = arith.mulf %152, %153 : vector<8x32xf32>
    %155 = vector.extract_strided_slice %150 {offsets = [0, 0], sizes = [8, 32], strides = [1, 1]} : vector<8x128xf32> to vector<8x32xf32>
    %156 = vector.extract_strided_slice %151 {offsets = [0, 64], sizes = [8, 32], strides = [1, 1]} : vector<8x128xf32> to vector<8x32xf32>
    %157 = arith.mulf %155, %156 : vector<8x32xf32>
    %158 = arith.addf %154, %157 : vector<8x32xf32>
    %159 = vector.extract_strided_slice %150 {offsets = [0, 96], sizes = [8, 32], strides = [1, 1]} : vector<8x128xf32> to vector<8x32xf32>
    %160 = math.tanh %158 : vector<8x32xf32>
    %161 = arith.mulf %159, %160 : vector<8x32xf32>
    %162 = tpu.concatenate %161, %158, %14 in 1 : vector<8x32xf32>, vector<8x32xf32>, vector<8x64xf32> -> vector<8x128xf32>
    %163 = arith.truncf %162 : vector<8x128xf32> to vector<8x128xbf16>
    %cst_39 = arith.constant dense<0.000000e+00> : vector<8x128xf32>
    %164 = tpu.matmul %163, %1, %cst_39 {dimension_numbers = #tpu.dot_dimension_numbers<[1], [0], [0], [1], [0, 0, 1, 1], [], []>} : vector<8x128xbf16>, vector<128x128xbf16>, vector<8x128xf32> -> vector<8x128xf32>
    %165 = arith.addf %164, %18 : vector<8x128xf32>
    %166 = math.tanh %165 : vector<8x128xf32>
    %167 = arith.truncf %166 : vector<8x128xf32> to vector<8x128xbf16>
    %cst_40 = arith.constant dense<0.000000e+00> : vector<8x128xf32>
    %168 = tpu.matmul %167, %2, %cst_40 {dimension_numbers = #tpu.dot_dimension_numbers<[1], [0], [0], [1], [0, 0, 1, 1], [], []>} : vector<8x128xbf16>, vector<128x128xbf16>, vector<8x128xf32> -> vector<8x128xf32>
    %169 = vector.broadcast %7 : vector<1x128xf32> to vector<8x128xf32>
    %170 = arith.addf %168, %169 : vector<8x128xf32>
    %cst_41 = arith.constant dense<0xFF800000> : vector<8xf32>
    %171 = vector.multi_reduction <maximumf>, %170, %cst_41 [1] : vector<8x128xf32> to vector<8xf32>
    %172 = vector.shape_cast %171 : vector<8xf32> to vector<8x1xf32>
    %173 = vector.broadcast %172 : vector<8x1xf32> to vector<8x128xf32>
    %174 = arith.subf %170, %173 : vector<8x128xf32>
    %175 = math.exp %174 : vector<8x128xf32>
    %cst_42 = arith.constant dense<0.000000e+00> : vector<8xf32>
    %176 = vector.multi_reduction <add>, %175, %cst_42 [1] : vector<8x128xf32> to vector<8xf32>
    %177 = vector.shape_cast %176 : vector<8xf32> to vector<8x1xf32>
    %178 = tpu.reciprocal %177 {approx = true} : vector<8x1xf32> -> vector<8x1xf32>
    %179 = vector.broadcast %178 : vector<8x1xf32> to vector<8x128xf32>
    %180 = arith.mulf %175, %179 : vector<8x128xf32>
    %181 = arith.mulf %180, %11 : vector<8x128xf32>
    %182 = arith.truncf %181 : vector<8x128xf32> to vector<8x128xbf16>
    %cst_43 = arith.constant dense<0.000000e+00> : vector<8x128xf32>
    %183 = tpu.matmul %182, %3, %cst_43 {dimension_numbers = #tpu.dot_dimension_numbers<[1], [0], [0], [1], [0, 0, 1, 1], [], []>} : vector<8x128xbf16>, vector<128x128xbf16>, vector<8x128xf32> -> vector<8x128xf32>
    %184 = vector.extract_strided_slice %12 {offsets = [0, 3], sizes = [8, 1], strides = [1, 1]} : vector<8x128xf32> to vector<8x1xf32>
    %185 = vector.broadcast %184 : vector<8x1xf32> to vector<8x128xf32>
    %186 = vector.broadcast %8 : vector<1x128xf32> to vector<8x128xf32>
    %187 = arith.mulf %185, %186 : vector<8x128xf32>
    %188 = arith.addf %162, %183 : vector<8x128xf32>
    %189 = arith.truncf %188 : vector<8x128xf32> to vector<8x128xbf16>
    %cst_44 = arith.constant dense<0.000000e+00> : vector<8x128xf32>
    %190 = tpu.matmul %189, %4, %cst_44 {dimension_numbers = #tpu.dot_dimension_numbers<[1], [0], [0], [1], [0, 0, 1, 1], [], []>} : vector<8x128xbf16>, vector<128x128xbf16>, vector<8x128xf32> -> vector<8x128xf32>
    %191 = arith.addf %190, %187 : vector<8x128xf32>
    %192 = vector.broadcast %9 : vector<1x128xf32> to vector<8x128xf32>
    %193 = arith.addf %191, %192 : vector<8x128xf32>
    %194 = arith.negf %193 : vector<8x128xf32>
    %195 = math.exp %194 : vector<8x128xf32>
    %cst_45 = arith.constant 1.000000e+00 : f32
    %196 = vector.broadcast %cst_45 : f32 to vector<8x128xf32>
    %197 = arith.addf %196, %195 : vector<8x128xf32>
    %198 = arith.divf %196, %197 : vector<8x128xf32>
    %199 = math.tanh %193 : vector<8x128xf32>
    %200 = vector.extract_strided_slice %198 {offsets = [0, 32], sizes = [8, 32], strides = [1, 1]} : vector<8x128xf32> to vector<8x32xf32>
    %201 = vector.extract_strided_slice %162 {offsets = [0, 32], sizes = [8, 32], strides = [1, 1]} : vector<8x128xf32> to vector<8x32xf32>
    %202 = arith.mulf %200, %201 : vector<8x32xf32>
    %203 = vector.extract_strided_slice %198 {offsets = [0, 0], sizes = [8, 32], strides = [1, 1]} : vector<8x128xf32> to vector<8x32xf32>
    %204 = vector.extract_strided_slice %199 {offsets = [0, 64], sizes = [8, 32], strides = [1, 1]} : vector<8x128xf32> to vector<8x32xf32>
    %205 = arith.mulf %203, %204 : vector<8x32xf32>
    %206 = arith.addf %202, %205 : vector<8x32xf32>
    %207 = vector.extract_strided_slice %198 {offsets = [0, 96], sizes = [8, 32], strides = [1, 1]} : vector<8x128xf32> to vector<8x32xf32>
    %208 = math.tanh %206 : vector<8x32xf32>
    %209 = arith.mulf %207, %208 : vector<8x32xf32>
    %210 = tpu.concatenate %209, %206, %14 in 1 : vector<8x32xf32>, vector<8x32xf32>, vector<8x64xf32> -> vector<8x128xf32>
    %211 = arith.truncf %210 : vector<8x128xf32> to vector<8x128xbf16>
    %cst_46 = arith.constant dense<0.000000e+00> : vector<8x128xf32>
    %212 = tpu.matmul %211, %1, %cst_46 {dimension_numbers = #tpu.dot_dimension_numbers<[1], [0], [0], [1], [0, 0, 1, 1], [], []>} : vector<8x128xbf16>, vector<128x128xbf16>, vector<8x128xf32> -> vector<8x128xf32>
    %213 = arith.addf %212, %18 : vector<8x128xf32>
    %214 = math.tanh %213 : vector<8x128xf32>
    %215 = arith.truncf %214 : vector<8x128xf32> to vector<8x128xbf16>
    %cst_47 = arith.constant dense<0.000000e+00> : vector<8x128xf32>
    %216 = tpu.matmul %215, %2, %cst_47 {dimension_numbers = #tpu.dot_dimension_numbers<[1], [0], [0], [1], [0, 0, 1, 1], [], []>} : vector<8x128xbf16>, vector<128x128xbf16>, vector<8x128xf32> -> vector<8x128xf32>
    %217 = vector.broadcast %7 : vector<1x128xf32> to vector<8x128xf32>
    %218 = arith.addf %216, %217 : vector<8x128xf32>
    %cst_48 = arith.constant dense<0xFF800000> : vector<8xf32>
    %219 = vector.multi_reduction <maximumf>, %218, %cst_48 [1] : vector<8x128xf32> to vector<8xf32>
    %220 = vector.shape_cast %219 : vector<8xf32> to vector<8x1xf32>
    %221 = vector.broadcast %220 : vector<8x1xf32> to vector<8x128xf32>
    %222 = arith.subf %218, %221 : vector<8x128xf32>
    %223 = math.exp %222 : vector<8x128xf32>
    %cst_49 = arith.constant dense<0.000000e+00> : vector<8xf32>
    %224 = vector.multi_reduction <add>, %223, %cst_49 [1] : vector<8x128xf32> to vector<8xf32>
    %225 = vector.shape_cast %224 : vector<8xf32> to vector<8x1xf32>
    %226 = tpu.reciprocal %225 {approx = true} : vector<8x1xf32> -> vector<8x1xf32>
    %227 = vector.broadcast %226 : vector<8x1xf32> to vector<8x128xf32>
    %228 = arith.mulf %223, %227 : vector<8x128xf32>
    %229 = arith.mulf %228, %11 : vector<8x128xf32>
    %230 = arith.truncf %229 : vector<8x128xf32> to vector<8x128xbf16>
    %cst_50 = arith.constant dense<0.000000e+00> : vector<8x128xf32>
    %231 = tpu.matmul %230, %3, %cst_50 {dimension_numbers = #tpu.dot_dimension_numbers<[1], [0], [0], [1], [0, 0, 1, 1], [], []>} : vector<8x128xbf16>, vector<128x128xbf16>, vector<8x128xf32> -> vector<8x128xf32>
    %232 = vector.extract_strided_slice %12 {offsets = [0, 4], sizes = [8, 1], strides = [1, 1]} : vector<8x128xf32> to vector<8x1xf32>
    %233 = vector.broadcast %232 : vector<8x1xf32> to vector<8x128xf32>
    %234 = vector.broadcast %8 : vector<1x128xf32> to vector<8x128xf32>
    %235 = arith.mulf %233, %234 : vector<8x128xf32>
    %236 = arith.addf %210, %231 : vector<8x128xf32>
    %237 = arith.truncf %236 : vector<8x128xf32> to vector<8x128xbf16>
    %cst_51 = arith.constant dense<0.000000e+00> : vector<8x128xf32>
    %238 = tpu.matmul %237, %4, %cst_51 {dimension_numbers = #tpu.dot_dimension_numbers<[1], [0], [0], [1], [0, 0, 1, 1], [], []>} : vector<8x128xbf16>, vector<128x128xbf16>, vector<8x128xf32> -> vector<8x128xf32>
    %239 = arith.addf %238, %235 : vector<8x128xf32>
    %240 = vector.broadcast %9 : vector<1x128xf32> to vector<8x128xf32>
    %241 = arith.addf %239, %240 : vector<8x128xf32>
    %242 = arith.negf %241 : vector<8x128xf32>
    %243 = math.exp %242 : vector<8x128xf32>
    %cst_52 = arith.constant 1.000000e+00 : f32
    %244 = vector.broadcast %cst_52 : f32 to vector<8x128xf32>
    %245 = arith.addf %244, %243 : vector<8x128xf32>
    %246 = arith.divf %244, %245 : vector<8x128xf32>
    %247 = math.tanh %241 : vector<8x128xf32>
    %248 = vector.extract_strided_slice %246 {offsets = [0, 32], sizes = [8, 32], strides = [1, 1]} : vector<8x128xf32> to vector<8x32xf32>
    %249 = vector.extract_strided_slice %210 {offsets = [0, 32], sizes = [8, 32], strides = [1, 1]} : vector<8x128xf32> to vector<8x32xf32>
    %250 = arith.mulf %248, %249 : vector<8x32xf32>
    %251 = vector.extract_strided_slice %246 {offsets = [0, 0], sizes = [8, 32], strides = [1, 1]} : vector<8x128xf32> to vector<8x32xf32>
    %252 = vector.extract_strided_slice %247 {offsets = [0, 64], sizes = [8, 32], strides = [1, 1]} : vector<8x128xf32> to vector<8x32xf32>
    %253 = arith.mulf %251, %252 : vector<8x32xf32>
    %254 = arith.addf %250, %253 : vector<8x32xf32>
    %255 = vector.extract_strided_slice %246 {offsets = [0, 96], sizes = [8, 32], strides = [1, 1]} : vector<8x128xf32> to vector<8x32xf32>
    %256 = math.tanh %254 : vector<8x32xf32>
    %257 = arith.mulf %255, %256 : vector<8x32xf32>
    %258 = tpu.concatenate %257, %254, %14 in 1 : vector<8x32xf32>, vector<8x32xf32>, vector<8x64xf32> -> vector<8x128xf32>
    %259 = arith.truncf %258 : vector<8x128xf32> to vector<8x128xbf16>
    %cst_53 = arith.constant dense<0.000000e+00> : vector<8x128xf32>
    %260 = tpu.matmul %259, %1, %cst_53 {dimension_numbers = #tpu.dot_dimension_numbers<[1], [0], [0], [1], [0, 0, 1, 1], [], []>} : vector<8x128xbf16>, vector<128x128xbf16>, vector<8x128xf32> -> vector<8x128xf32>
    %261 = arith.addf %260, %18 : vector<8x128xf32>
    %262 = math.tanh %261 : vector<8x128xf32>
    %263 = arith.truncf %262 : vector<8x128xf32> to vector<8x128xbf16>
    %cst_54 = arith.constant dense<0.000000e+00> : vector<8x128xf32>
    %264 = tpu.matmul %263, %2, %cst_54 {dimension_numbers = #tpu.dot_dimension_numbers<[1], [0], [0], [1], [0, 0, 1, 1], [], []>} : vector<8x128xbf16>, vector<128x128xbf16>, vector<8x128xf32> -> vector<8x128xf32>
    %265 = vector.broadcast %7 : vector<1x128xf32> to vector<8x128xf32>
    %266 = arith.addf %264, %265 : vector<8x128xf32>
    %cst_55 = arith.constant dense<0xFF800000> : vector<8xf32>
    %267 = vector.multi_reduction <maximumf>, %266, %cst_55 [1] : vector<8x128xf32> to vector<8xf32>
    %268 = vector.shape_cast %267 : vector<8xf32> to vector<8x1xf32>
    %269 = vector.broadcast %268 : vector<8x1xf32> to vector<8x128xf32>
    %270 = arith.subf %266, %269 : vector<8x128xf32>
    %271 = math.exp %270 : vector<8x128xf32>
    %cst_56 = arith.constant dense<0.000000e+00> : vector<8xf32>
    %272 = vector.multi_reduction <add>, %271, %cst_56 [1] : vector<8x128xf32> to vector<8xf32>
    %273 = vector.shape_cast %272 : vector<8xf32> to vector<8x1xf32>
    %274 = tpu.reciprocal %273 {approx = true} : vector<8x1xf32> -> vector<8x1xf32>
    %275 = vector.broadcast %274 : vector<8x1xf32> to vector<8x128xf32>
    %276 = arith.mulf %271, %275 : vector<8x128xf32>
    %277 = arith.mulf %276, %11 : vector<8x128xf32>
    %278 = arith.truncf %277 : vector<8x128xf32> to vector<8x128xbf16>
    %cst_57 = arith.constant dense<0.000000e+00> : vector<8x128xf32>
    %279 = tpu.matmul %278, %3, %cst_57 {dimension_numbers = #tpu.dot_dimension_numbers<[1], [0], [0], [1], [0, 0, 1, 1], [], []>} : vector<8x128xbf16>, vector<128x128xbf16>, vector<8x128xf32> -> vector<8x128xf32>
    %280 = vector.extract_strided_slice %12 {offsets = [0, 5], sizes = [8, 1], strides = [1, 1]} : vector<8x128xf32> to vector<8x1xf32>
    %281 = vector.broadcast %280 : vector<8x1xf32> to vector<8x128xf32>
    %282 = vector.broadcast %8 : vector<1x128xf32> to vector<8x128xf32>
    %283 = arith.mulf %281, %282 : vector<8x128xf32>
    %284 = arith.addf %258, %279 : vector<8x128xf32>
    %285 = arith.truncf %284 : vector<8x128xf32> to vector<8x128xbf16>
    %cst_58 = arith.constant dense<0.000000e+00> : vector<8x128xf32>
    %286 = tpu.matmul %285, %4, %cst_58 {dimension_numbers = #tpu.dot_dimension_numbers<[1], [0], [0], [1], [0, 0, 1, 1], [], []>} : vector<8x128xbf16>, vector<128x128xbf16>, vector<8x128xf32> -> vector<8x128xf32>
    %287 = arith.addf %286, %283 : vector<8x128xf32>
    %288 = vector.broadcast %9 : vector<1x128xf32> to vector<8x128xf32>
    %289 = arith.addf %287, %288 : vector<8x128xf32>
    %290 = arith.negf %289 : vector<8x128xf32>
    %291 = math.exp %290 : vector<8x128xf32>
    %cst_59 = arith.constant 1.000000e+00 : f32
    %292 = vector.broadcast %cst_59 : f32 to vector<8x128xf32>
    %293 = arith.addf %292, %291 : vector<8x128xf32>
    %294 = arith.divf %292, %293 : vector<8x128xf32>
    %295 = math.tanh %289 : vector<8x128xf32>
    %296 = vector.extract_strided_slice %294 {offsets = [0, 32], sizes = [8, 32], strides = [1, 1]} : vector<8x128xf32> to vector<8x32xf32>
    %297 = vector.extract_strided_slice %258 {offsets = [0, 32], sizes = [8, 32], strides = [1, 1]} : vector<8x128xf32> to vector<8x32xf32>
    %298 = arith.mulf %296, %297 : vector<8x32xf32>
    %299 = vector.extract_strided_slice %294 {offsets = [0, 0], sizes = [8, 32], strides = [1, 1]} : vector<8x128xf32> to vector<8x32xf32>
    %300 = vector.extract_strided_slice %295 {offsets = [0, 64], sizes = [8, 32], strides = [1, 1]} : vector<8x128xf32> to vector<8x32xf32>
    %301 = arith.mulf %299, %300 : vector<8x32xf32>
    %302 = arith.addf %298, %301 : vector<8x32xf32>
    %303 = vector.extract_strided_slice %294 {offsets = [0, 96], sizes = [8, 32], strides = [1, 1]} : vector<8x128xf32> to vector<8x32xf32>
    %304 = math.tanh %302 : vector<8x32xf32>
    %305 = arith.mulf %303, %304 : vector<8x32xf32>
    %306 = tpu.concatenate %305, %302, %14 in 1 : vector<8x32xf32>, vector<8x32xf32>, vector<8x64xf32> -> vector<8x128xf32>
    %307 = arith.truncf %306 : vector<8x128xf32> to vector<8x128xbf16>
    %cst_60 = arith.constant dense<0.000000e+00> : vector<8x128xf32>
    %308 = tpu.matmul %307, %1, %cst_60 {dimension_numbers = #tpu.dot_dimension_numbers<[1], [0], [0], [1], [0, 0, 1, 1], [], []>} : vector<8x128xbf16>, vector<128x128xbf16>, vector<8x128xf32> -> vector<8x128xf32>
    %309 = arith.addf %308, %18 : vector<8x128xf32>
    %310 = math.tanh %309 : vector<8x128xf32>
    %311 = arith.truncf %310 : vector<8x128xf32> to vector<8x128xbf16>
    %cst_61 = arith.constant dense<0.000000e+00> : vector<8x128xf32>
    %312 = tpu.matmul %311, %2, %cst_61 {dimension_numbers = #tpu.dot_dimension_numbers<[1], [0], [0], [1], [0, 0, 1, 1], [], []>} : vector<8x128xbf16>, vector<128x128xbf16>, vector<8x128xf32> -> vector<8x128xf32>
    %313 = vector.broadcast %7 : vector<1x128xf32> to vector<8x128xf32>
    %314 = arith.addf %312, %313 : vector<8x128xf32>
    %cst_62 = arith.constant dense<0xFF800000> : vector<8xf32>
    %315 = vector.multi_reduction <maximumf>, %314, %cst_62 [1] : vector<8x128xf32> to vector<8xf32>
    %316 = vector.shape_cast %315 : vector<8xf32> to vector<8x1xf32>
    %317 = vector.broadcast %316 : vector<8x1xf32> to vector<8x128xf32>
    %318 = arith.subf %314, %317 : vector<8x128xf32>
    %319 = math.exp %318 : vector<8x128xf32>
    %cst_63 = arith.constant dense<0.000000e+00> : vector<8xf32>
    %320 = vector.multi_reduction <add>, %319, %cst_63 [1] : vector<8x128xf32> to vector<8xf32>
    %321 = vector.shape_cast %320 : vector<8xf32> to vector<8x1xf32>
    %322 = tpu.reciprocal %321 {approx = true} : vector<8x1xf32> -> vector<8x1xf32>
    %323 = vector.broadcast %322 : vector<8x1xf32> to vector<8x128xf32>
    %324 = arith.mulf %319, %323 : vector<8x128xf32>
    %325 = arith.mulf %324, %11 : vector<8x128xf32>
    %326 = arith.truncf %325 : vector<8x128xf32> to vector<8x128xbf16>
    %cst_64 = arith.constant dense<0.000000e+00> : vector<8x128xf32>
    %327 = tpu.matmul %326, %3, %cst_64 {dimension_numbers = #tpu.dot_dimension_numbers<[1], [0], [0], [1], [0, 0, 1, 1], [], []>} : vector<8x128xbf16>, vector<128x128xbf16>, vector<8x128xf32> -> vector<8x128xf32>
    %328 = vector.extract_strided_slice %12 {offsets = [0, 6], sizes = [8, 1], strides = [1, 1]} : vector<8x128xf32> to vector<8x1xf32>
    %329 = vector.broadcast %328 : vector<8x1xf32> to vector<8x128xf32>
    %330 = vector.broadcast %8 : vector<1x128xf32> to vector<8x128xf32>
    %331 = arith.mulf %329, %330 : vector<8x128xf32>
    %332 = arith.addf %306, %327 : vector<8x128xf32>
    %333 = arith.truncf %332 : vector<8x128xf32> to vector<8x128xbf16>
    %cst_65 = arith.constant dense<0.000000e+00> : vector<8x128xf32>
    %334 = tpu.matmul %333, %4, %cst_65 {dimension_numbers = #tpu.dot_dimension_numbers<[1], [0], [0], [1], [0, 0, 1, 1], [], []>} : vector<8x128xbf16>, vector<128x128xbf16>, vector<8x128xf32> -> vector<8x128xf32>
    %335 = arith.addf %334, %331 : vector<8x128xf32>
    %336 = vector.broadcast %9 : vector<1x128xf32> to vector<8x128xf32>
    %337 = arith.addf %335, %336 : vector<8x128xf32>
    %338 = arith.negf %337 : vector<8x128xf32>
    %339 = math.exp %338 : vector<8x128xf32>
    %cst_66 = arith.constant 1.000000e+00 : f32
    %340 = vector.broadcast %cst_66 : f32 to vector<8x128xf32>
    %341 = arith.addf %340, %339 : vector<8x128xf32>
    %342 = arith.divf %340, %341 : vector<8x128xf32>
    %343 = math.tanh %337 : vector<8x128xf32>
    %344 = vector.extract_strided_slice %342 {offsets = [0, 32], sizes = [8, 32], strides = [1, 1]} : vector<8x128xf32> to vector<8x32xf32>
    %345 = vector.extract_strided_slice %306 {offsets = [0, 32], sizes = [8, 32], strides = [1, 1]} : vector<8x128xf32> to vector<8x32xf32>
    %346 = arith.mulf %344, %345 : vector<8x32xf32>
    %347 = vector.extract_strided_slice %342 {offsets = [0, 0], sizes = [8, 32], strides = [1, 1]} : vector<8x128xf32> to vector<8x32xf32>
    %348 = vector.extract_strided_slice %343 {offsets = [0, 64], sizes = [8, 32], strides = [1, 1]} : vector<8x128xf32> to vector<8x32xf32>
    %349 = arith.mulf %347, %348 : vector<8x32xf32>
    %350 = arith.addf %346, %349 : vector<8x32xf32>
    %351 = vector.extract_strided_slice %342 {offsets = [0, 96], sizes = [8, 32], strides = [1, 1]} : vector<8x128xf32> to vector<8x32xf32>
    %352 = math.tanh %350 : vector<8x32xf32>
    %353 = arith.mulf %351, %352 : vector<8x32xf32>
    %354 = tpu.concatenate %353, %350, %14 in 1 : vector<8x32xf32>, vector<8x32xf32>, vector<8x64xf32> -> vector<8x128xf32>
    %355 = arith.truncf %354 : vector<8x128xf32> to vector<8x128xbf16>
    %cst_67 = arith.constant dense<0.000000e+00> : vector<8x128xf32>
    %356 = tpu.matmul %355, %1, %cst_67 {dimension_numbers = #tpu.dot_dimension_numbers<[1], [0], [0], [1], [0, 0, 1, 1], [], []>} : vector<8x128xbf16>, vector<128x128xbf16>, vector<8x128xf32> -> vector<8x128xf32>
    %357 = arith.addf %356, %18 : vector<8x128xf32>
    %358 = math.tanh %357 : vector<8x128xf32>
    %359 = arith.truncf %358 : vector<8x128xf32> to vector<8x128xbf16>
    %cst_68 = arith.constant dense<0.000000e+00> : vector<8x128xf32>
    %360 = tpu.matmul %359, %2, %cst_68 {dimension_numbers = #tpu.dot_dimension_numbers<[1], [0], [0], [1], [0, 0, 1, 1], [], []>} : vector<8x128xbf16>, vector<128x128xbf16>, vector<8x128xf32> -> vector<8x128xf32>
    %361 = vector.broadcast %7 : vector<1x128xf32> to vector<8x128xf32>
    %362 = arith.addf %360, %361 : vector<8x128xf32>
    %cst_69 = arith.constant dense<0xFF800000> : vector<8xf32>
    %363 = vector.multi_reduction <maximumf>, %362, %cst_69 [1] : vector<8x128xf32> to vector<8xf32>
    %364 = vector.shape_cast %363 : vector<8xf32> to vector<8x1xf32>
    %365 = vector.broadcast %364 : vector<8x1xf32> to vector<8x128xf32>
    %366 = arith.subf %362, %365 : vector<8x128xf32>
    %367 = math.exp %366 : vector<8x128xf32>
    %cst_70 = arith.constant dense<0.000000e+00> : vector<8xf32>
    %368 = vector.multi_reduction <add>, %367, %cst_70 [1] : vector<8x128xf32> to vector<8xf32>
    %369 = vector.shape_cast %368 : vector<8xf32> to vector<8x1xf32>
    %370 = tpu.reciprocal %369 {approx = true} : vector<8x1xf32> -> vector<8x1xf32>
    %371 = vector.broadcast %370 : vector<8x1xf32> to vector<8x128xf32>
    %372 = arith.mulf %367, %371 : vector<8x128xf32>
    %373 = arith.mulf %372, %11 : vector<8x128xf32>
    %374 = arith.truncf %373 : vector<8x128xf32> to vector<8x128xbf16>
    %cst_71 = arith.constant dense<0.000000e+00> : vector<8x128xf32>
    %375 = tpu.matmul %374, %3, %cst_71 {dimension_numbers = #tpu.dot_dimension_numbers<[1], [0], [0], [1], [0, 0, 1, 1], [], []>} : vector<8x128xbf16>, vector<128x128xbf16>, vector<8x128xf32> -> vector<8x128xf32>
    %376 = arith.addf %354, %375 : vector<8x128xf32>
    %377 = arith.truncf %376 : vector<8x128xf32> to vector<8x128xbf16>
    %cst_72 = arith.constant dense<0.000000e+00> : vector<8x128xf32>
    %378 = tpu.matmul %377, %5, %cst_72 {dimension_numbers = #tpu.dot_dimension_numbers<[1], [0], [0], [1], [0, 0, 1, 1], [], []>} : vector<8x128xbf16>, vector<128x128xbf16>, vector<8x128xf32> -> vector<8x128xf32>
    %379 = vector.broadcast %10 : vector<1x128xf32> to vector<8x128xf32>
    %380 = arith.addf %378, %379 : vector<8x128xf32>
    %c0_73 = arith.constant 0 : index
    %c0_74 = arith.constant 0 : index
    %381 = vector.load %arg5[%c0_73, %c0_74] : memref<8x128xf32, #tpu.memory_space<vmem>>, vector<8x128xf32>
    tpu.vector_store %arg5[%c0_73, %c0_74], %380 {strides = array<i32>} : memref<8x128xf32, #tpu.memory_space<vmem>>, vector<8x128xf32>,
    return
  }
  func.func @transform_0(%arg0: i32) -> (i32, i32) {
    %c0_i32 = arith.constant 0 : i32
    %c0_i32_0 = arith.constant 0 : i32
    return %arg0, %c0_i32 : i32, i32
  }
  func.func @transform_1(%arg0: i32) -> (i32, i32) {
    %c0_i32 = arith.constant 0 : i32
    %c0_i32_0 = arith.constant 0 : i32
    return %arg0, %c0_i32 : i32, i32
  }
  func.func @transform_2(%arg0: i32) -> (i32, i32) {
    %c0_i32 = arith.constant 0 : i32
    %c0_i32_0 = arith.constant 0 : i32
    %c0_i32_1 = arith.constant 0 : i32
    return %c0_i32, %c0_i32_0 : i32, i32
  }
  func.func @transform_3(%arg0: i32) -> (i32, i32) {
    %c0_i32 = arith.constant 0 : i32
    %c0_i32_0 = arith.constant 0 : i32
    %c0_i32_1 = arith.constant 0 : i32
    return %c0_i32, %c0_i32_0 : i32, i32
  }
  func.func @transform_4(%arg0: i32) -> (i32, i32) {
    %c0_i32 = arith.constant 0 : i32
    %c0_i32_0 = arith.constant 0 : i32
    return %arg0, %c0_i32 : i32, i32
  }
}

</mosaic_0001>

<llo_original>
// kernel: tpu_custom_call.1
$region0: #{tpu_custom_call.1}
  #allocation0 [shape = 'u32[]', space=smem, size = 0x4, offset = 0x4, fixed_abs, tag = 'smem constant byte address 0x4 - core index']
  #allocation1 [shape = 'u32[144,128]{1,0:T(1,128)}', space=vmem, size = 0x12000, scoped, tag = 'internal scratch']
  %s0 = inlined_call_operand.hbm [shape: f32[8,128], index: 0, kind: input, shape index: {}]
  %s1 = inlined_call_operand.hbm [shape: f32[8,128], index: 1, kind: input, shape index: {}]
  %s2 = inlined_call_operand.hbm [shape: bf16[768,128], index: 2, kind: input, shape index: {}]
  %s3 = inlined_call_operand.hbm [shape: f32[8,128], index: 3, kind: input, shape index: {}]
  %s4 = inlined_call_operand.hbm [shape: f32[8,128], index: 4, kind: output, shape index: {}]
  %s5 = sld [smem:[#allocation0]]
  $region42: #{tpu_custom_call.1} parent=0
    _
  %s7 = ssub.s32 1, %s5
  %s8 = scalar_select 0, %s7, %s5
  $region1: #{tpu_custom_call.1} parent=0
    #allocation2 [shape = 'u8[4096]{0}', space=vmem, size = 0x1000, scoped, tag = 'input window, operand 0, single buffered']
    #allocation3 [shape = 's32[1]{0}', space=sflag, size = 0x4, scoped, tag = 'scoped memory for tpu_custom_call.1']
    #allocation4 [shape = 's32[1]{0}', space=sflag, size = 0x4, scoped, tag = 'scoped memory for tpu_custom_call.1']
    #allocation5 [shape = 'u8[4096]{0}', space=vmem, size = 0x1000, scoped, tag = 'input window, operand 1, single buffered']
    #allocation6 [shape = 's32[1]{0}', space=sflag, size = 0x4, scoped, tag = 'scoped memory for tpu_custom_call.1']
    #allocation7 [shape = 'u8[196608]{0}', space=vmem, size = 0x30000, scoped, tag = 'input window, operand 2, single buffered']
    #allocation8 [shape = 'u8[4096]{0}', space=vmem, size = 0x1000, scoped, tag = 'input window, operand 3, single buffered']
    #allocation9 [shape = 's32[1]{0}', space=sflag, size = 0x4, scoped, tag = 'scoped memory for tpu_custom_call.1']
    #allocation10 [shape = 'u8[4096]{0}', space=vmem, size = 0x1000, scoped, tag = 'output window, operand 0, single buffered']
    %9 = vsyncpa [#allocation3], 0
    %10 = vsyncpa [#allocation6], 0
    %11 = vsyncpa [#allocation9], 0
    %12 = vsyncpa [#allocation4], 0
    // Predicated region
    $region2: #{tpu_custom_call.1} parent=1 // pred_check
      _
    $region3: #{tpu_custom_call.1} parent=1 // pred_check_branch
      %14 = sbr.rel (0) target = $region5
    $region4: #{tpu_custom_call.1} parent=1 // pred_region
      %s16 = ssub.s32 128, 128
      %17 = vsyncadd [#allocation3], %s16
      %s19 = sshll.u32 [#allocation2], 4
      %s20 = int_to_ptr.vmem [resolvable:$true] %s19
      %22 = dma.hbm_to_vmem [thread:$0]  %s0, 128, %s20, [#allocation3]
    $region5: #{tpu_custom_call.1} parent=1 // pred_fallthru
      _
    // Predicated region
    $region6: #{tpu_custom_call.1} parent=1 // pred_check
      _
    $region7: #{tpu_custom_call.1} parent=1 // pred_check_branch
      %24 = sbr.rel (0) target = $region9
    $region8: #{tpu_custom_call.1} parent=1 // pred_region
      %s26 = ssub.s32 128, 128
      %27 = vsyncadd [#allocation6], %s26
      %s29 = sshll.u32 [#allocation5], 4
      %s30 = int_to_ptr.vmem [resolvable:$true] %s29
      %32 = dma.hbm_to_vmem [thread:$0]  %s1, 128, %s30, [#allocation6]
    $region9: #{tpu_custom_call.1} parent=1 // pred_fallthru
      _
    // Predicated region
    $region10: #{tpu_custom_call.1} parent=1 // pred_check
      _
    $region11: #{tpu_custom_call.1} parent=1 // pred_check_branch
      %34 = sbr.rel (0) target = $region13
    $region12: #{tpu_custom_call.1} parent=1 // pred_region
      %s36 = ssub.s32 6144, 6144
      %37 = vsyncadd [#allocation6], %s36
      %s38 = sshll.u32 [#allocation7], 4
      %s39 = int_to_ptr.vmem [resolvable:$true] %s38
      %44 = dma.hbm_to_vmem [thread:$0]  %s2, 6144, %s39, [#allocation6], 64, 64, 4
    $region13: #{tpu_custom_call.1} parent=1 // pred_fallthru
      _
    // Predicated region
    $region14: #{tpu_custom_call.1} parent=1 // pred_check
      _
    $region15: #{tpu_custom_call.1} parent=1 // pred_check_branch
      %46 = sbr.rel (0) target = $region17
    $region16: #{tpu_custom_call.1} parent=1 // pred_region
      %s48 = ssub.s32 128, 128
      %49 = vsyncadd [#allocation9], %s48
      %s51 = sshll.u32 [#allocation8], 4
      %s52 = int_to_ptr.vmem [resolvable:$true] %s51
      %54 = dma.hbm_to_vmem [thread:$0]  %s3, 128, %s52, [#allocation9]
    $region17: #{tpu_custom_call.1} parent=1 // pred_fallthru
      _
    // Predicated region
    $region18: #{tpu_custom_call.1} parent=1 // pred_check
      _
    $region19: #{tpu_custom_call.1} parent=1 // pred_check_branch
      %56 = sbr.rel (0) target = $region21
    $region20: #{tpu_custom_call.1} parent=1 // pred_region
      %57 = dma.done [#allocation3], 128
    $region21: #{tpu_custom_call.1} parent=1 // pred_fallthru
      _
    // Predicated region
    $region22: #{tpu_custom_call.1} parent=1 // pred_check
      _
    $region23: #{tpu_custom_call.1} parent=1 // pred_check_branch
      %59 = sbr.rel (0) target = $region25
    $region24: #{tpu_custom_call.1} parent=1 // pred_region
      %60 = dma.done [#allocation6], 128
    $region25: #{tpu_custom_call.1} parent=1 // pred_fallthru
      _
    // Predicated region
    $region26: #{tpu_custom_call.1} parent=1 // pred_check
      _
    $region27: #{tpu_custom_call.1} parent=1 // pred_check_branch
      %62 = sbr.rel (0) target = $region29
    $region28: #{tpu_custom_call.1} parent=1 // pred_region
      %63 = dma.done [#allocation6], 6144
    $region29: #{tpu_custom_call.1} parent=1 // pred_fallthru
      _
    // Predicated region
    $region30: #{tpu_custom_call.1} parent=1 // pred_check
      _
    $region31: #{tpu_custom_call.1} parent=1 // pred_check_branch
      %65 = sbr.rel (0) target = $region33
    $region32: #{tpu_custom_call.1} parent=1 // pred_region
      %66 = dma.done [#allocation9], 128
    $region33: #{tpu_custom_call.1} parent=1 // pred_fallthru
      _
    %v68 = vld [vmem:[#allocation7] sm:$0xf]
    %v69 = vld [vmem:[#allocation7 + $0x4] sm:$0xf]
    %v70 = vld [vmem:[#allocation7 + $0x8] sm:$0xf]
    %v71 = vld [vmem:[#allocation7 + $0xc] sm:$0xf]
    %v72 = vld [vmem:[#allocation7 + $0x10] sm:$0xf]
    %v73 = vld [vmem:[#allocation7 + $0x14] sm:$0xf]
    %v74 = vld [vmem:[#allocation7 + $0x18] sm:$0xf]
    %v75 = vld [vmem:[#allocation7 + $0x1c] sm:$0xf]
    %v76 = vld [vmem:[#allocation7 + $0x20] sm:$0xf]
    %v77 = vld [vmem:[#allocation7 + $0x24] sm:$0xf]
    %v78 = vld [vmem:[#allocation7 + $0x28] sm:$0xf]
    %v79 = vld [vmem:[#allocation7 + $0x2c] sm:$0xf]
    %v80 = vld [vmem:[#allocation7 + $0x30] sm:$0xf]
    %v81 = vld [vmem:[#allocation7 + $0x34] sm:$0xf]
    %v82 = vld [vmem:[#allocation7 + $0x38] sm:$0xf]
    %v83 = vld [vmem:[#allocation7 + $0x3c] sm:$0xf]
    %v84 = vld [vmem:[#allocation7 + $0x40] sm:$0xf]
    %v85 = vld [vmem:[#allocation7 + $0x44] sm:$0xf]
    %v86 = vld [vmem:[#allocation7 + $0x48] sm:$0xf]
    %v87 = vld [vmem:[#allocation7 + $0x4c] sm:$0xf]
    %v88 = vld [vmem:[#allocation7 + $0x50] sm:$0xf]
    %v89 = vld [vmem:[#allocation7 + $0x54] sm:$0xf]
    %v90 = vld [vmem:[#allocation7 + $0x58] sm:$0xf]
    %v91 = vld [vmem:[#allocation7 + $0x5c] sm:$0xf]
    %v92 = vld [vmem:[#allocation7 + $0x60] sm:$0xf]
    %v93 = vld [vmem:[#allocation7 + $0x64] sm:$0xf]
    %v94 = vld [vmem:[#allocation7 + $0x68] sm:$0xf]
    %v95 = vld [vmem:[#allocation7 + $0x6c] sm:$0xf]
    %v96 = vld [vmem:[#allocation7 + $0x70] sm:$0xf]
    %v97 = vld [vmem:[#allocation7 + $0x74] sm:$0xf]
    %v98 = vld [vmem:[#allocation7 + $0x78] sm:$0xf]
    %v99 = vld [vmem:[#allocation7 + $0x7c] sm:$0xf]
    %v100 = vld [vmem:[#allocation7 + $0x80] sm:$0xf]
    %v101 = vld [vmem:[#allocation7 + $0x84] sm:$0xf]
    %v102 = vld [vmem:[#allocation7 + $0x88] sm:$0xf]
    %v103 = vld [vmem:[#allocation7 + $0x8c] sm:$0xf]
    %v104 = vld [vmem:[#allocation7 + $0x90] sm:$0xf]
    %v105 = vld [vmem:[#allocation7 + $0x94] sm:$0xf]
    %v106 = vld [vmem:[#allocation7 + $0x98] sm:$0xf]
    %v107 = vld [vmem:[#allocation7 + $0x9c] sm:$0xf]
    %v108 = vld [vmem:[#allocation7 + $0xa0] sm:$0xf]
    %v109 = vld [vmem:[#allocation7 + $0xa4] sm:$0xf]
    %v110 = vld [vmem:[#allocation7 + $0xa8] sm:$0xf]
    %v111 = vld [vmem:[#allocation7 + $0xac] sm:$0xf]
    %v112 = vld [vmem:[#allocation7 + $0xb0] sm:$0xf]
    %v113 = vld [vmem:[#allocation7 + $0xb4] sm:$0xf]
    %v114 = vld [vmem:[#allocation7 + $0xb8] sm:$0xf]
    %v115 = vld [vmem:[#allocation7 + $0xbc] sm:$0xf]
    %v116 = vld [vmem:[#allocation7 + $0xc0] sm:$0xf]
    %v117 = vld [vmem:[#allocation7 + $0xc4] sm:$0xf]
    %v118 = vld [vmem:[#allocation7 + $0xc8] sm:$0xf]
    %v119 = vld [vmem:[#allocation7 + $0xcc] sm:$0xf]
    %v120 = vld [vmem:[#allocation7 + $0xd0] sm:$0xf]
    %v121 = vld [vmem:[#allocation7 + $0xd4] sm:$0xf]
    %v122 = vld [vmem:[#allocation7 + $0xd8] sm:$0xf]
    %v123 = vld [vmem:[#allocation7 + $0xdc] sm:$0xf]
    %v124 = vld [vmem:[#allocation7 + $0xe0] sm:$0xf]
    %v125 = vld [vmem:[#allocation7 + $0xe4] sm:$0xf]
    %v126 = vld [vmem:[#allocation7 + $0xe8] sm:$0xf]
    %v127 = vld [vmem:[#allocation7 + $0xec] sm:$0xf]
    %v128 = vld [vmem:[#allocation7 + $0xf0] sm:$0xf]
    %v129 = vld [vmem:[#allocation7 + $0xf4] sm:$0xf]
    %v130 = vld [vmem:[#allocation7 + $0xf8] sm:$0xf]
    %v131 = vld [vmem:[#allocation7 + $0xfc] sm:$0xf]
    %v132 = vld [vmem:[#allocation7 + $0x100] sm:$0xf]
    %v133 = vld [vmem:[#allocation7 + $0x104] sm:$0xf]
    %v134 = vld [vmem:[#allocation7 + $0x108] sm:$0xf]
    %v135 = vld [vmem:[#allocation7 + $0x10c] sm:$0xf]
    %v136 = vld [vmem:[#allocation7 + $0x110] sm:$0xf]
    %v137 = vld [vmem:[#allocation7 + $0x114] sm:$0xf]
    %v138 = vld [vmem:[#allocation7 + $0x118] sm:$0xf]
    %v139 = vld [vmem:[#allocation7 + $0x11c] sm:$0xf]
    %v140 = vld [vmem:[#allocation7 + $0x120] sm:$0xf]
    %v141 = vld [vmem:[#allocation7 + $0x124] sm:$0xf]
    %v142 = vld [vmem:[#allocation7 + $0x128] sm:$0xf]
    %v143 = vld [vmem:[#allocation7 + $0x12c] sm:$0xf]
    %v144 = vld [vmem:[#allocation7 + $0x130] sm:$0xf]
    %v145 = vld [vmem:[#allocation7 + $0x134] sm:$0xf]
    %v146 = vld [vmem:[#allocation7 + $0x138] sm:$0xf]
    %v147 = vld [vmem:[#allocation7 + $0x13c] sm:$0xf]
    %v148 = vld [vmem:[#allocation7 + $0x140] sm:$0xf]
    %v149 = vld [vmem:[#allocation7 + $0x144] sm:$0xf]
    %v150 = vld [vmem:[#allocation7 + $0x148] sm:$0xf]
    %v151 = vld [vmem:[#allocation7 + $0x14c] sm:$0xf]
    %v152 = vld [vmem:[#allocation7 + $0x150] sm:$0xf]
    %v153 = vld [vmem:[#allocation7 + $0x154] sm:$0xf]
    %v154 = vld [vmem:[#allocation7 + $0x158] sm:$0xf]
    %v155 = vld [vmem:[#allocation7 + $0x15c] sm:$0xf]
    %v156 = vld [vmem:[#allocation7 + $0x160] sm:$0xf]
    %v157 = vld [vmem:[#allocation7 + $0x164] sm:$0xf]
    %v158 = vld [vmem:[#allocation7 + $0x168] sm:$0xf]
    %v159 = vld [vmem:[#allocation7 + $0x16c] sm:$0xf]
    %v160 = vld [vmem:[#allocation7 + $0x170] sm:$0xf]
    %v161 = vld [vmem:[#allocation7 + $0x174] sm:$0xf]
    %v162 = vld [vmem:[#allocation7 + $0x178] sm:$0xf]
    %v163 = vld [vmem:[#allocation7 + $0x17c] sm:$0xf]
    %v164 = vld [vmem:[#allocation8] sm:$0x1]
    %v165 = vld [vmem:[#allocation8 + $0x1] sm:$0x1]
    %v166 = vld [vmem:[#allocation8 + $0x2] sm:$0x1]
    %v167 = vld [vmem:[#allocation8 + $0x3] sm:$0x1]
    %v168 = vld [vmem:[#allocation8 + $0x4] sm:$0x1]
    %v169 = vld [vmem:[#allocation2] sm:$0xff]
    %v170 = vld [vmem:[#allocation5] sm:$0xff]
    %v171 = vpack.c.bf16 %v169, %v169
    %v172 = vlaneseq
    %v173 = vshrl.u32 %v172, 7
    %v174 = vsub.s32 0, %v173
    %v175 = vrot.slane %v164, %v174
    %v192 = vunpack.c.l.b16 %v68
    %v193 = vunpack.c.l.b16 %v69
    %v194 = vunpack.c.l.b16 %v70
    %v195 = vunpack.c.l.b16 %v71
    %v196 = vunpack.c.l.b16 %v72
    %v197 = vunpack.c.l.b16 %v73
    %v198 = vunpack.c.l.b16 %v74
    %v199 = vunpack.c.l.b16 %v75
    %v200 = vunpack.c.l.b16 %v76
    %v201 = vunpack.c.l.b16 %v77
    %v202 = vunpack.c.l.b16 %v78
    %v203 = vunpack.c.l.b16 %v79
    %v204 = vunpack.c.l.b16 %v80
    %v205 = vunpack.c.l.b16 %v81
    %v206 = vunpack.c.l.b16 %v82
    %v207 = vunpack.c.l.b16 %v83
    %v208 = vpack.c.b16 %v193, %v192
    %v209 = vpack.c.b16 %v195, %v194
    %v210 = vpack.c.b16 %v197, %v196
    %v211 = vpack.c.b16 %v199, %v198
    %v212 = vpack.c.b16 %v201, %v200
    %v213 = vpack.c.b16 %v203, %v202
    %v214 = vpack.c.b16 %v205, %v204
    %v215 = vpack.c.b16 %v207, %v206
    %224 = vmatprep.subr.bf16.mxu0 0
    %225 = vmatpush1.bf16.msra.mxu0 %v215
    %226 = vmatprep.subr.bf16.mxu0 0
    %227 = vmatpush1.bf16.msra.mxu0 %v214
    %228 = vmatprep.subr.bf16.mxu0 0
    %229 = vmatpush1.bf16.msra.mxu0 %v213
    %230 = vmatprep.subr.bf16.mxu0 0
    %231 = vmatpush1.bf16.msra.mxu0 %v212
    %232 = vmatprep.subr.bf16.mxu0 0
    %233 = vmatpush1.bf16.msra.mxu0 %v211
    %234 = vmatprep.subr.bf16.mxu0 0
    %235 = vmatpush1.bf16.msra.mxu0 %v210
    %236 = vmatprep.subr.bf16.mxu0 0
    %237 = vmatpush1.bf16.msra.mxu0 %v209
    %238 = vmatprep.subr.bf16.mxu0 0
    %239 = vmatpush1.bf16.msra.mxu0 %v208
    %240 = vmatprep.subr.bf16.mxu0 0
    %241 = vmatpush2.bf16.msra.mxu0 0
    %242 = vmatprep.subr.bf16.mxu0 0
    %243 = vmatpush2.bf16.msra.mxu0 0
    %244 = vmatprep.subr.bf16.mxu0 0
    %245 = vmatpush2.bf16.msra.mxu0 0
    %246 = vmatprep.subr.bf16.mxu0 0
    %247 = vmatpush2.bf16.msra.mxu0 0
    %248 = vmatprep.subr.bf16.mxu0 0
    %249 = vmatpush2.bf16.msra.mxu0 0
    %250 = vmatprep.subr.bf16.mxu0 0
    %251 = vmatpush2.bf16.msra.mxu0 0
    %252 = vmatprep.subr.bf16.mxu0 0
    %253 = vmatpush2.bf16.msra.mxu0 0
    %254 = vmatprep.subr.bf16.mxu0 0
    %255 = vmatpush2.bf16.msra.mxu0 0
    %256 = vmatprep.mubr.bf16.mxu0 0
    %257 = vmatmul.mubr.bf16.gmra.mxu0 %v171
    %v258 = vpop.f32.mrf.mxu0
    %v259 = vadd.f32 %v175, %v258
    %v260 = vpop.f32.mrf.mxu0
    %v261 = vpop.f32.mrf.mxu0
    %v262 = vpop.f32.mrf.mxu0
    %263 = vdwg.mxu0
    %v280 = vunpack.c.l.b16 %v84
    %v281 = vunpack.c.l.b16 %v85
    %v282 = vunpack.c.l.b16 %v86
    %v283 = vunpack.c.l.b16 %v87
    %v284 = vunpack.c.l.b16 %v88
    %v285 = vunpack.c.l.b16 %v89
    %v286 = vunpack.c.l.b16 %v90
    %v287 = vunpack.c.l.b16 %v91
    %v288 = vunpack.c.l.b16 %v92
    %v289 = vunpack.c.l.b16 %v93
    %v290 = vunpack.c.l.b16 %v94
    %v291 = vunpack.c.l.b16 %v95
    %v292 = vunpack.c.l.b16 %v96
    %v293 = vunpack.c.l.b16 %v97
    %v294 = vunpack.c.l.b16 %v98
    %v295 = vunpack.c.l.b16 %v99
    %v296 = vpack.c.b16 %v281, %v280
    %v297 = vpack.c.b16 %v283, %v282
    %v298 = vpack.c.b16 %v285, %v284
    %v299 = vpack.c.b16 %v287, %v286
    %v300 = vpack.c.b16 %v289, %v288
    %v301 = vpack.c.b16 %v291, %v290
    %v302 = vpack.c.b16 %v293, %v292
    %v303 = vpack.c.b16 %v295, %v294
    %312 = vmatprep.subr.bf16.mxu0 0
    %313 = vmatpush1.bf16.msra.mxu0 %v303
    %314 = vmatprep.subr.bf16.mxu0 0
    %315 = vmatpush1.bf16.msra.mxu0 %v302
    %316 = vmatprep.subr.bf16.mxu0 0
    %317 = vmatpush1.bf16.msra.mxu0 %v301
    %318 = vmatprep.subr.bf16.mxu0 0
    %319 = vmatpush1.bf16.msra.mxu0 %v300
    %320 = vmatprep.subr.bf16.mxu0 0
    %321 = vmatpush1.bf16.msra.mxu0 %v299
    %322 = vmatprep.subr.bf16.mxu0 0
    %323 = vmatpush1.bf16.msra.mxu0 %v298
    %324 = vmatprep.subr.bf16.mxu0 0
    %325 = vmatpush1.bf16.msra.mxu0 %v297
    %326 = vmatprep.subr.bf16.mxu0 0
    %327 = vmatpush1.bf16.msra.mxu0 %v296
    %328 = vmatprep.subr.bf16.mxu0 0
    %329 = vmatpush2.bf16.msra.mxu0 0
    %330 = vmatprep.subr.bf16.mxu0 0
    %331 = vmatpush2.bf16.msra.mxu0 0
    %332 = vmatprep.subr.bf16.mxu0 0
    %333 = vmatpush2.bf16.msra.mxu0 0
    %334 = vmatprep.subr.bf16.mxu0 0
    %335 = vmatpush2.bf16.msra.mxu0 0
    %336 = vmatprep.subr.bf16.mxu0 0
    %337 = vmatpush2.bf16.msra.mxu0 0
    %338 = vmatprep.subr.bf16.mxu0 0
    %339 = vmatpush2.bf16.msra.mxu0 0
    %340 = vmatprep.subr.bf16.mxu0 0
    %341 = vmatpush2.bf16.msra.mxu0 0
    %342 = vmatprep.subr.bf16.mxu0 0
    %343 = vmatpush2.bf16.msra.mxu0 0
    %344 = vmatprep.mubr.bf16.mxu0 0
    %345 = vmatmul.mubr.bf16.gmra.mxu0 0
    %v346 = vpop.f32.mrf.mxu0
    %v347 = vadd.f32 %v259, %v346
    %v348 = vpop.f32.mrf.mxu0
    %v349 = vpop.f32.mrf.mxu0
    %v350 = vpop.f32.mrf.mxu0
    %351 = vdwg.mxu0
    %v352 = vtanh.pop %v347
    %v353 = vpack.c.bf16 %v352, %v352
    %v354 = vlaneseq
    %v355 = vshrl.u32 %v354, 7
    %v356 = vsub.s32 0, %v355
    %v357 = vrot.slane %v165, %v356
    %v374 = vunpack.c.l.b16 %v100
    %v375 = vunpack.c.l.b16 %v101
    %v376 = vunpack.c.l.b16 %v102
    %v377 = vunpack.c.l.b16 %v103
    %v378 = vunpack.c.l.b16 %v104
    %v379 = vunpack.c.l.b16 %v105
    %v380 = vunpack.c.l.b16 %v106
    %v381 = vunpack.c.l.b16 %v107
    %v382 = vunpack.c.l.b16 %v108
    %v383 = vunpack.c.l.b16 %v109
    %v384 = vunpack.c.l.b16 %v110
    %v385 = vunpack.c.l.b16 %v111
    %v386 = vunpack.c.l.b16 %v112
    %v387 = vunpack.c.l.b16 %v113
    %v388 = vunpack.c.l.b16 %v114
    %v389 = vunpack.c.l.b16 %v115
    %v390 = vpack.c.b16 %v375, %v374
    %v391 = vpack.c.b16 %v377, %v376
    %v392 = vpack.c.b16 %v379, %v378
    %v393 = vpack.c.b16 %v381, %v380
    %v394 = vpack.c.b16 %v383, %v382
    %v395 = vpack.c.b16 %v385, %v384
    %v396 = vpack.c.b16 %v387, %v386
    %v397 = vpack.c.b16 %v389, %v388
    %406 = vmatprep.subr.bf16.mxu0 0
    %407 = vmatpush1.bf16.msra.mxu0 %v397
    %408 = vmatprep.subr.bf16.mxu0 0
    %409 = vmatpush1.bf16.msra.mxu0 %v396
    %410 = vmatprep.subr.bf16.mxu0 0
    %411 = vmatpush1.bf16.msra.mxu0 %v395
    %412 = vmatprep.subr.bf16.mxu0 0
    %413 = vmatpush1.bf16.msra.mxu0 %v394
    %414 = vmatprep.subr.bf16.mxu0 0
    %415 = vmatpush1.bf16.msra.mxu0 %v393
    %416 = vmatprep.subr.bf16.mxu0 0
    %417 = vmatpush1.bf16.msra.mxu0 %v392
    %418 = vmatprep.subr.bf16.mxu0 0
    %419 = vmatpush1.bf16.msra.mxu0 %v391
    %420 = vmatprep.subr.bf16.mxu0 0
    %421 = vmatpush1.bf16.msra.mxu0 %v390
    %422 = vmatprep.subr.bf16.mxu0 0
    %423 = vmatpush2.bf16.msra.mxu0 0
    %424 = vmatprep.subr.bf16.mxu0 0
    %425 = vmatpush2.bf16.msra.mxu0 0
    %426 = vmatprep.subr.bf16.mxu0 0
    %427 = vmatpush2.bf16.msra.mxu0 0
    %428 = vmatprep.subr.bf16.mxu0 0
    %429 = vmatpush2.bf16.msra.mxu0 0
    %430 = vmatprep.subr.bf16.mxu0 0
    %431 = vmatpush2.bf16.msra.mxu0 0
    %432 = vmatprep.subr.bf16.mxu0 0
    %433 = vmatpush2.bf16.msra.mxu0 0
    %434 = vmatprep.subr.bf16.mxu0 0
    %435 = vmatpush2.bf16.msra.mxu0 0
    %436 = vmatprep.subr.bf16.mxu0 0
    %437 = vmatpush2.bf16.msra.mxu0 0
    %438 = vmatprep.mubr.bf16.mxu0 0
    %439 = vmatmul.mubr.bf16.gmra.mxu0 %v353
    %v440 = vpop.f32.mrf.mxu0
    %v441 = vadd.f32 %v357, %v440
    %v442 = vpop.f32.mrf.mxu0
    %v443 = vpop.f32.mrf.mxu0
    %v444 = vpop.f32.mrf.mxu0
    %445 = vdwg.mxu0
    %446 = vmax.xlane.f32.xlu0 %v441
    %v447 = vpop.xlane.xlu0 %446
    %v448 = vsub.f32 %v441, %v447
    %v449 = vmul.f32 %v448, 1.442695
    %v450 = vpow.pop %v449
    %451 = vadd.xlane.f32.xlu0 %v450
    %v452 = vpop.xlane.xlu0 %451
    %v453 = vrcp.pop %v452
    %v454 = vmul.f32 %v450, %v453
    %v455 = vmul.f32 %v454, %v169
    %v456 = vpack.c.bf16 %v455, %v455
    %458 = vset.pattern.permute.xlu0 0
    %459 = vperm.xlu0 %458, %v170
    %v460 = vpop.permute.xlu0 %459
    %v462 = vlaneseq
    %v463 = vshrl.u32 %v462, 7
    %v464 = vsub.s32 0, %v463
    %v465 = vrot.slane %v166, %v464
    %v466 = vmul.f32 %v460, %v465
    %v483 = vunpack.c.l.b16 %v116
    %v484 = vunpack.c.l.b16 %v117
    %v485 = vunpack.c.l.b16 %v118
    %v486 = vunpack.c.l.b16 %v119
    %v487 = vunpack.c.l.b16 %v120
    %v488 = vunpack.c.l.b16 %v121
    %v489 = vunpack.c.l.b16 %v122
    %v490 = vunpack.c.l.b16 %v123
    %v491 = vunpack.c.l.b16 %v124
    %v492 = vunpack.c.l.b16 %v125
    %v493 = vunpack.c.l.b16 %v126
    %v494 = vunpack.c.l.b16 %v127
    %v495 = vunpack.c.l.b16 %v128
    %v496 = vunpack.c.l.b16 %v129
    %v497 = vunpack.c.l.b16 %v130
    %v498 = vunpack.c.l.b16 %v131
    %v499 = vpack.c.b16 %v484, %v483
    %v500 = vpack.c.b16 %v486, %v485
    %v501 = vpack.c.b16 %v488, %v487
    %v502 = vpack.c.b16 %v490, %v489
    %v503 = vpack.c.b16 %v492, %v491
    %v504 = vpack.c.b16 %v494, %v493
    %v505 = vpack.c.b16 %v496, %v495
    %v506 = vpack.c.b16 %v498, %v497
    %515 = vmatprep.subr.bf16.mxu0 0
    %516 = vmatpush1.bf16.msra.mxu0 %v506
    %517 = vmatprep.subr.bf16.mxu0 0
    %518 = vmatpush1.bf16.msra.mxu0 %v505
    %519 = vmatprep.subr.bf16.mxu0 0
    %520 = vmatpush1.bf16.msra.mxu0 %v504
    %521 = vmatprep.subr.bf16.mxu0 0
    %522 = vmatpush1.bf16.msra.mxu0 %v503
    %523 = vmatprep.subr.bf16.mxu0 0
    %524 = vmatpush1.bf16.msra.mxu0 %v502
    %525 = vmatprep.subr.bf16.mxu0 0
    %526 = vmatpush1.bf16.msra.mxu0 %v501
    %527 = vmatprep.subr.bf16.mxu0 0
    %528 = vmatpush1.bf16.msra.mxu0 %v500
    %529 = vmatprep.subr.bf16.mxu0 0
    %530 = vmatpush1.bf16.msra.mxu0 %v499
    %531 = vmatprep.subr.bf16.mxu0 0
    %532 = vmatpush2.bf16.msra.mxu0 0
    %533 = vmatprep.subr.bf16.mxu0 0
    %534 = vmatpush2.bf16.msra.mxu0 0
    %535 = vmatprep.subr.bf16.mxu0 0
    %536 = vmatpush2.bf16.msra.mxu0 0
    %537 = vmatprep.subr.bf16.mxu0 0
    %538 = vmatpush2.bf16.msra.mxu0 0
    %539 = vmatprep.subr.bf16.mxu0 0
    %540 = vmatpush2.bf16.msra.mxu0 0
    %541 = vmatprep.subr.bf16.mxu0 0
    %542 = vmatpush2.bf16.msra.mxu0 0
    %543 = vmatprep.subr.bf16.mxu0 0
    %544 = vmatpush2.bf16.msra.mxu0 0
    %545 = vmatprep.subr.bf16.mxu0 0
    %546 = vmatpush2.bf16.msra.mxu0 0
    %547 = vmatprep.mubr.bf16.mxu0 0
    %548 = vmatmul.mubr.bf16.gmra.mxu0 %v456
    %v549 = vpop.f32.mrf.mxu0
    %v550 = vadd.f32 0.0, %v549
    %v551 = vpop.f32.mrf.mxu0
    %v552 = vpop.f32.mrf.mxu0
    %v553 = vpop.f32.mrf.mxu0
    %554 = vdwg.mxu0
    %v555 = vpack.c.bf16 %v550, %v550
    %v572 = vunpack.c.l.b16 %v132
    %v573 = vunpack.c.l.b16 %v133
    %v574 = vunpack.c.l.b16 %v134
    %v575 = vunpack.c.l.b16 %v135
    %v576 = vunpack.c.l.b16 %v136
    %v577 = vunpack.c.l.b16 %v137
    %v578 = vunpack.c.l.b16 %v138
    %v579 = vunpack.c.l.b16 %v139
    %v580 = vunpack.c.l.b16 %v140
    %v581 = vunpack.c.l.b16 %v141
    %v582 = vunpack.c.l.b16 %v142
    %v583 = vunpack.c.l.b16 %v143
    %v584 = vunpack.c.l.b16 %v144
    %v585 = vunpack.c.l.b16 %v145
    %v586 = vunpack.c.l.b16 %v146
    %v587 = vunpack.c.l.b16 %v147
    %v588 = vpack.c.b16 %v573, %v572
    %v589 = vpack.c.b16 %v575, %v574
    %v590 = vpack.c.b16 %v577, %v576
    %v591 = vpack.c.b16 %v579, %v578
    %v592 = vpack.c.b16 %v581, %v580
    %v593 = vpack.c.b16 %v583, %v582
    %v594 = vpack.c.b16 %v585, %v584
    %v595 = vpack.c.b16 %v587, %v586
    %604 = vmatprep.subr.bf16.mxu0 0
    %605 = vmatpush1.bf16.msra.mxu0 %v595
    %606 = vmatprep.subr.bf16.mxu0 0
    %607 = vmatpush1.bf16.msra.mxu0 %v594
    %608 = vmatprep.subr.bf16.mxu0 0
    %609 = vmatpush1.bf16.msra.mxu0 %v593
    %610 = vmatprep.subr.bf16.mxu0 0
    %611 = vmatpush1.bf16.msra.mxu0 %v592
    %612 = vmatprep.subr.bf16.mxu0 0
    %613 = vmatpush1.bf16.msra.mxu0 %v591
    %614 = vmatprep.subr.bf16.mxu0 0
    %615 = vmatpush1.bf16.msra.mxu0 %v590
    %616 = vmatprep.subr.bf16.mxu0 0
    %617 = vmatpush1.bf16.msra.mxu0 %v589
    %618 = vmatprep.subr.bf16.mxu0 0
    %619 = vmatpush1.bf16.msra.mxu0 %v588
    %620 = vmatprep.subr.bf16.mxu0 0
    %621 = vmatpush2.bf16.msra.mxu0 0
    %622 = vmatprep.subr.bf16.mxu0 0
    %623 = vmatpush2.bf16.msra.mxu0 0
    %624 = vmatprep.subr.bf16.mxu0 0
    %625 = vmatpush2.bf16.msra.mxu0 0
    %626 = vmatprep.subr.bf16.mxu0 0
    %627 = vmatpush2.bf16.msra.mxu0 0
    %628 = vmatprep.subr.bf16.mxu0 0
    %629 = vmatpush2.bf16.msra.mxu0 0
    %630 = vmatprep.subr.bf16.mxu0 0
    %631 = vmatpush2.bf16.msra.mxu0 0
    %632 = vmatprep.subr.bf16.mxu0 0
    %633 = vmatpush2.bf16.msra.mxu0 0
    %634 = vmatprep.subr.bf16.mxu0 0
    %635 = vmatpush2.bf16.msra.mxu0 0
    %636 = vmatprep.mubr.bf16.mxu0 0
    %637 = vmatmul.mubr.bf16.gmra.mxu0 %v555
    %v638 = vpop.f32.mrf.mxu0
    %v639 = vadd.f32 %v466, %v638
    %v640 = vpop.f32.mrf.mxu0
    %v641 = vpop.f32.mrf.mxu0
    %v642 = vpop.f32.mrf.mxu0
    %643 = vdwg.mxu0
    %v644 = vlaneseq
    %v645 = vshrl.u32 %v644, 7
    %v646 = vsub.s32 0, %v645
    %v647 = vrot.slane %v167, %v646
    %v648 = vadd.f32 %v639, %v647
    %v649 = vxor.u32 %v648, 2147483648
    %v650 = vmul.f32 %v649, 1.442695
    %v651 = vpow.pop %v650
    %v652 = vadd.f32 %v651, 1.0
    %v653 = vrcp.pop %v652
    %v654 = vmul.f32 1.0, %v653
    %v655 = vtanh.pop %v648
    %v656 = vmul.f32 %v654, 0.0
    %658 = vrot.lane.b32.xlu0 %v655, 64
    %v659 = vpop.permute.xlu0 %658
    %v661 = vmul.f32 %v654, %v659
    %663 = vrot.lane.b32.xlu0 %v661, 32
    %v664 = vpop.permute.xlu0 %663
    %v666 = vadd.f32 %v656, %v664
    %v667 = vtanh.pop %v666
    %669 = vrot.lane.b32.xlu0 %v667, 64
    %v670 = vpop.permute.xlu0 %669
    %v672 = vmul.f32 %v654, %v670
    %674 = vrot.lane.b32.xlu0 %v672, 32
    %v675 = vpop.permute.xlu0 %674
    %vm677 = vcmask 261120
    %v678 = vsel %vm677, %v675, %v666
    %vm679 = vcmask 523264
    %v680 = vsel %vm679, %v678, 0.0
    %v681 = vpack.c.bf16 %v680, %v680
    %682 = vmatprep.subr.bf16.mxu0 0
    %683 = vmatpush1.bf16.msra.mxu0 %v303
    %684 = vmatprep.subr.bf16.mxu0 0
    %685 = vmatpush1.bf16.msra.mxu0 %v302
    %686 = vmatprep.subr.bf16.mxu0 0
    %687 = vmatpush1.bf16.msra.mxu0 %v301
    %688 = vmatprep.subr.bf16.mxu0 0
    %689 = vmatpush1.bf16.msra.mxu0 %v300
    %690 = vmatprep.subr.bf16.mxu0 0
    %691 = vmatpush1.bf16.msra.mxu0 %v299
    %692 = vmatprep.subr.bf16.mxu0 0
    %693 = vmatpush1.bf16.msra.mxu0 %v298
    %694 = vmatprep.subr.bf16.mxu0 0
    %695 = vmatpush1.bf16.msra.mxu0 %v297
    %696 = vmatprep.subr.bf16.mxu0 0
    %697 = vmatpush1.bf16.msra.mxu0 %v296
    %698 = vmatprep.subr.bf16.mxu0 0
    %699 = vmatpush2.bf16.msra.mxu0 0
    %700 = vmatprep.subr.bf16.mxu0 0
    %701 = vmatpush2.bf16.msra.mxu0 0
    %702 = vmatprep.subr.bf16.mxu0 0
    %703 = vmatpush2.bf16.msra.mxu0 0
    %704 = vmatprep.subr.bf16.mxu0 0
    %705 = vmatpush2.bf16.msra.mxu0 0
    %706 = vmatprep.subr.bf16.mxu0 0
    %707 = vmatpush2.bf16.msra.mxu0 0
    %708 = vmatprep.subr.bf16.mxu0 0
    %709 = vmatpush2.bf16.msra.mxu0 0
    %710 = vmatprep.subr.bf16.mxu0 0
    %711 = vmatpush2.bf16.msra.mxu0 0
    %712 = vmatprep.subr.bf16.mxu0 0
    %713 = vmatpush2.bf16.msra.mxu0 0
    %714 = vmatprep.mubr.bf16.mxu0 0
    %715 = vmatmul.mubr.bf16.gmra.mxu0 %v681
    %v716 = vpop.f32.mrf.mxu0
    %v717 = vadd.f32 %v259, %v716
    %v718 = vpop.f32.mrf.mxu0
    %v719 = vpop.f32.mrf.mxu0
    %v720 = vpop.f32.mrf.mxu0
    %721 = vdwg.mxu0
    %v722 = vtanh.pop %v717
    %v723 = vpack.c.bf16 %v722, %v722
    %724 = vmatprep.subr.bf16.mxu0 0
    %725 = vmatpush1.bf16.msra.mxu0 %v397
    %726 = vmatprep.subr.bf16.mxu0 0
    %727 = vmatpush1.bf16.msra.mxu0 %v396
    %728 = vmatprep.subr.bf16.mxu0 0
    %729 = vmatpush1.bf16.msra.mxu0 %v395
    %730 = vmatprep.subr.bf16.mxu0 0
    %731 = vmatpush1.bf16.msra.mxu0 %v394
    %732 = vmatprep.subr.bf16.mxu0 0
    %733 = vmatpush1.bf16.msra.mxu0 %v393
    %734 = vmatprep.subr.bf16.mxu0 0
    %735 = vmatpush1.bf16.msra.mxu0 %v392
    %736 = vmatprep.subr.bf16.mxu0 0
    %737 = vmatpush1.bf16.msra.mxu0 %v391
    %738 = vmatprep.subr.bf16.mxu0 0
    %739 = vmatpush1.bf16.msra.mxu0 %v390
    %740 = vmatprep.subr.bf16.mxu0 0
    %741 = vmatpush2.bf16.msra.mxu0 0
    %742 = vmatprep.subr.bf16.mxu0 0
    %743 = vmatpush2.bf16.msra.mxu0 0
    %744 = vmatprep.subr.bf16.mxu0 0
    %745 = vmatpush2.bf16.msra.mxu0 0
    %746 = vmatprep.subr.bf16.mxu0 0
    %747 = vmatpush2.bf16.msra.mxu0 0
    %748 = vmatprep.subr.bf16.mxu0 0
    %749 = vmatpush2.bf16.msra.mxu0 0
    %750 = vmatprep.subr.bf16.mxu0 0
    %751 = vmatpush2.bf16.msra.mxu0 0
    %752 = vmatprep.subr.bf16.mxu0 0
    %753 = vmatpush2.bf16.msra.mxu0 0
    %754 = vmatprep.subr.bf16.mxu0 0
    %755 = vmatpush2.bf16.msra.mxu0 0
    %756 = vmatprep.mubr.bf16.mxu0 0
    %757 = vmatmul.mubr.bf16.gmra.mxu0 %v723
    %v758 = vpop.f32.mrf.mxu0
    %v759 = vadd.f32 %v357, %v758
    %v760 = vpop.f32.mrf.mxu0
    %v761 = vpop.f32.mrf.mxu0
    %v762 = vpop.f32.mrf.mxu0
    %763 = vdwg.mxu0
    %764 = vmax.xlane.f32.xlu0 %v759
    %v765 = vpop.xlane.xlu0 %764
    %v766 = vsub.f32 %v759, %v765
    %v767 = vmul.f32 %v766, 1.442695
    %v768 = vpow.pop %v767
    %769 = vadd.xlane.f32.xlu0 %v768
    %v770 = vpop.xlane.xlu0 %769
    %v771 = vrcp.pop %v770
    %v772 = vmul.f32 %v768, %v771
    %v773 = vmul.f32 %v772, %v169
    %v774 = vpack.c.bf16 %v773, %v773
    %775 = vmatprep.subr.bf16.mxu0 0
    %776 = vmatpush1.bf16.msra.mxu0 %v506
    %777 = vmatprep.subr.bf16.mxu0 0
    %778 = vmatpush1.bf16.msra.mxu0 %v505
    %779 = vmatprep.subr.bf16.mxu0 0
    %780 = vmatpush1.bf16.msra.mxu0 %v504
    %781 = vmatprep.subr.bf16.mxu0 0
    %782 = vmatpush1.bf16.msra.mxu0 %v503
    %783 = vmatprep.subr.bf16.mxu0 0
    %784 = vmatpush1.bf16.msra.mxu0 %v502
    %785 = vmatprep.subr.bf16.mxu0 0
    %786 = vmatpush1.bf16.msra.mxu0 %v501
    %787 = vmatprep.subr.bf16.mxu0 0
    %788 = vmatpush1.bf16.msra.mxu0 %v500
    %789 = vmatprep.subr.bf16.mxu0 0
    %790 = vmatpush1.bf16.msra.mxu0 %v499
    %791 = vmatprep.subr.bf16.mxu0 0
    %792 = vmatpush2.bf16.msra.mxu0 0
    %793 = vmatprep.subr.bf16.mxu0 0
    %794 = vmatpush2.bf16.msra.mxu0 0
    %795 = vmatprep.subr.bf16.mxu0 0
    %796 = vmatpush2.bf16.msra.mxu0 0
    %797 = vmatprep.subr.bf16.mxu0 0
    %798 = vmatpush2.bf16.msra.mxu0 0
    %799 = vmatprep.subr.bf16.mxu0 0
    %800 = vmatpush2.bf16.msra.mxu0 0
    %801 = vmatprep.subr.bf16.mxu0 0
    %802 = vmatpush2.bf16.msra.mxu0 0
    %803 = vmatprep.subr.bf16.mxu0 0
    %804 = vmatpush2.bf16.msra.mxu0 0
    %805 = vmatprep.subr.bf16.mxu0 0
    %806 = vmatpush2.bf16.msra.mxu0 0
    %807 = vmatprep.mubr.bf16.mxu0 0
    %808 = vmatmul.mubr.bf16.gmra.mxu0 %v774
    %v809 = vpop.f32.mrf.mxu0
    %v810 = vadd.f32 0.0, %v809
    %v811 = vpop.f32.mrf.mxu0
    %v812 = vpop.f32.mrf.mxu0
    %v813 = vpop.f32.mrf.mxu0
    %814 = vdwg.mxu0
    %815 = vset.pattern.permute.xlu0 1
    %816 = vperm.xlu0 %815, %v170
    %v817 = vpop.permute.xlu0 %816
    %v819 = vmul.f32 %v817, %v465
    %v820 = vadd.f32 %v680, %v810
    %v821 = vpack.c.bf16 %v820, %v820
    %822 = vmatprep.subr.bf16.mxu0 0
    %823 = vmatpush1.bf16.msra.mxu0 %v595
    %824 = vmatprep.subr.bf16.mxu0 0
    %825 = vmatpush1.bf16.msra.mxu0 %v594
    %826 = vmatprep.subr.bf16.mxu0 0
    %827 = vmatpush1.bf16.msra.mxu0 %v593
    %828 = vmatprep.subr.bf16.mxu0 0
    %829 = vmatpush1.bf16.msra.mxu0 %v592
    %830 = vmatprep.subr.bf16.mxu0 0
    %831 = vmatpush1.bf16.msra.mxu0 %v591
    %832 = vmatprep.subr.bf16.mxu0 0
    %833 = vmatpush1.bf16.msra.mxu0 %v590
    %834 = vmatprep.subr.bf16.mxu0 0
    %835 = vmatpush1.bf16.msra.mxu0 %v589
    %836 = vmatprep.subr.bf16.mxu0 0
    %837 = vmatpush1.bf16.msra.mxu0 %v588
    %838 = vmatprep.subr.bf16.mxu0 0
    %839 = vmatpush2.bf16.msra.mxu0 0
    %840 = vmatprep.subr.bf16.mxu0 0
    %841 = vmatpush2.bf16.msra.mxu0 0
    %842 = vmatprep.subr.bf16.mxu0 0
    %843 = vmatpush2.bf16.msra.mxu0 0
    %844 = vmatprep.subr.bf16.mxu0 0
    %845 = vmatpush2.bf16.msra.mxu0 0
    %846 = vmatprep.subr.bf16.mxu0 0
    %847 = vmatpush2.bf16.msra.mxu0 0
    %848 = vmatprep.subr.bf16.mxu0 0
    %849 = vmatpush2.bf16.msra.mxu0 0
    %850 = vmatprep.subr.bf16.mxu0 0
    %851 = vmatpush2.bf16.msra.mxu0 0
    %852 = vmatprep.subr.bf16.mxu0 0
    %853 = vmatpush2.bf16.msra.mxu0 0
    %854 = vmatprep.mubr.bf16.mxu0 0
    %855 = vmatmul.mubr.bf16.gmra.mxu0 %v821
    %v856 = vpop.f32.mrf.mxu0
    %v857 = vadd.f32 %v819, %v856
    %v858 = vpop.f32.mrf.mxu0
    %v859 = vpop.f32.mrf.mxu0
    %v860 = vpop.f32.mrf.mxu0
    %861 = vdwg.mxu0
    %v862 = vadd.f32 %v857, %v647
    %v863 = vxor.u32 %v862, 2147483648
    %v864 = vmul.f32 %v863, 1.442695
    %v865 = vpow.pop %v864
    %v866 = vadd.f32 %v865, 1.0
    %v867 = vrcp.pop %v866
    %v868 = vmul.f32 1.0, %v867
    %v869 = vtanh.pop %v862
    %v870 = vmul.f32 %v868, %v680
    %872 = vrot.lane.b32.xlu0 %v869, 64
    %v873 = vpop.permute.xlu0 %872
    %v875 = vmul.f32 %v868, %v873
    %877 = vrot.lane.b32.xlu0 %v875, 32
    %v878 = vpop.permute.xlu0 %877
    %v880 = vadd.f32 %v870, %v878
    %v881 = vtanh.pop %v880
    %883 = vrot.lane.b32.xlu0 %v881, 64
    %v884 = vpop.permute.xlu0 %883
    %v886 = vmul.f32 %v868, %v884
    %888 = vrot.lane.b32.xlu0 %v886, 32
    %v889 = vpop.permute.xlu0 %888
    %v891 = vsel %vm677, %v889, %v880
    %v892 = vsel %vm679, %v891, 0.0
    %v893 = vpack.c.bf16 %v892, %v892
    %894 = vmatprep.subr.bf16.mxu0 0
    %895 = vmatpush1.bf16.msra.mxu0 %v303
    %896 = vmatprep.subr.bf16.mxu0 0
    %897 = vmatpush1.bf16.msra.mxu0 %v302
    %898 = vmatprep.subr.bf16.mxu0 0
    %899 = vmatpush1.bf16.msra.mxu0 %v301
    %900 = vmatprep.subr.bf16.mxu0 0
    %901 = vmatpush1.bf16.msra.mxu0 %v300
    %902 = vmatprep.subr.bf16.mxu0 0
    %903 = vmatpush1.bf16.msra.mxu0 %v299
    %904 = vmatprep.subr.bf16.mxu0 0
    %905 = vmatpush1.bf16.msra.mxu0 %v298
    %906 = vmatprep.subr.bf16.mxu0 0
    %907 = vmatpush1.bf16.msra.mxu0 %v297
    %908 = vmatprep.subr.bf16.mxu0 0
    %909 = vmatpush1.bf16.msra.mxu0 %v296
    %910 = vmatprep.subr.bf16.mxu0 0
    %911 = vmatpush2.bf16.msra.mxu0 0
    %912 = vmatprep.subr.bf16.mxu0 0
    %913 = vmatpush2.bf16.msra.mxu0 0
    %914 = vmatprep.subr.bf16.mxu0 0
    %915 = vmatpush2.bf16.msra.mxu0 0
    %916 = vmatprep.subr.bf16.mxu0 0
    %917 = vmatpush2.bf16.msra.mxu0 0
    %918 = vmatprep.subr.bf16.mxu0 0
    %919 = vmatpush2.bf16.msra.mxu0 0
    %920 = vmatprep.subr.bf16.mxu0 0
    %921 = vmatpush2.bf16.msra.mxu0 0
    %922 = vmatprep.subr.bf16.mxu0 0
    %923 = vmatpush2.bf16.msra.mxu0 0
    %924 = vmatprep.subr.bf16.mxu0 0
    %925 = vmatpush2.bf16.msra.mxu0 0
    %926 = vmatprep.mubr.bf16.mxu0 0
    %927 = vmatmul.mubr.bf16.gmra.mxu0 %v893
    %v928 = vpop.f32.mrf.mxu0
    %v929 = vadd.f32 %v259, %v928
    %v930 = vpop.f32.mrf.mxu0
    %v931 = vpop.f32.mrf.mxu0
    %v932 = vpop.f32.mrf.mxu0
    %933 = vdwg.mxu0
    %v934 = vtanh.pop %v929
    %v935 = vpack.c.bf16 %v934, %v934
    %936 = vmatprep.subr.bf16.mxu0 0
    %937 = vmatpush1.bf16.msra.mxu0 %v397
    %938 = vmatprep.subr.bf16.mxu0 0
    %939 = vmatpush1.bf16.msra.mxu0 %v396
    %940 = vmatprep.subr.bf16.mxu0 0
    %941 = vmatpush1.bf16.msra.mxu0 %v395
    %942 = vmatprep.subr.bf16.mxu0 0
    %943 = vmatpush1.bf16.msra.mxu0 %v394
    %944 = vmatprep.subr.bf16.mxu0 0
    %945 = vmatpush1.bf16.msra.mxu0 %v393
    %946 = vmatprep.subr.bf16.mxu0 0
    %947 = vmatpush1.bf16.msra.mxu0 %v392
    %948 = vmatprep.subr.bf16.mxu0 0
    %949 = vmatpush1.bf16.msra.mxu0 %v391
    %950 = vmatprep.subr.bf16.mxu0 0
    %951 = vmatpush1.bf16.msra.mxu0 %v390
    %952 = vmatprep.subr.bf16.mxu0 0
    %953 = vmatpush2.bf16.msra.mxu0 0
    %954 = vmatprep.subr.bf16.mxu0 0
    %955 = vmatpush2.bf16.msra.mxu0 0
    %956 = vmatprep.subr.bf16.mxu0 0
    %957 = vmatpush2.bf16.msra.mxu0 0
    %958 = vmatprep.subr.bf16.mxu0 0
    %959 = vmatpush2.bf16.msra.mxu0 0
    %960 = vmatprep.subr.bf16.mxu0 0
    %961 = vmatpush2.bf16.msra.mxu0 0
    %962 = vmatprep.subr.bf16.mxu0 0
    %963 = vmatpush2.bf16.msra.mxu0 0
    %964 = vmatprep.subr.bf16.mxu0 0
    %965 = vmatpush2.bf16.msra.mxu0 0
    %966 = vmatprep.subr.bf16.mxu0 0
    %967 = vmatpush2.bf16.msra.mxu0 0
    %968 = vmatprep.mubr.bf16.mxu0 0
    %969 = vmatmul.mubr.bf16.gmra.mxu0 %v935
    %v970 = vpop.f32.mrf.mxu0
    %v971 = vadd.f32 %v357, %v970
    %v972 = vpop.f32.mrf.mxu0
    %v973 = vpop.f32.mrf.mxu0
    %v974 = vpop.f32.mrf.mxu0
    %975 = vdwg.mxu0
    %976 = vmax.xlane.f32.xlu0 %v971
    %v977 = vpop.xlane.xlu0 %976
    %v978 = vsub.f32 %v971, %v977
    %v979 = vmul.f32 %v978, 1.442695
    %v980 = vpow.pop %v979
    %981 = vadd.xlane.f32.xlu0 %v980
    %v982 = vpop.xlane.xlu0 %981
    %v983 = vrcp.pop %v982
    %v984 = vmul.f32 %v980, %v983
    %v985 = vmul.f32 %v984, %v169
    %v986 = vpack.c.bf16 %v985, %v985
    %987 = vmatprep.subr.bf16.mxu0 0
    %988 = vmatpush1.bf16.msra.mxu0 %v506
    %989 = vmatprep.subr.bf16.mxu0 0
    %990 = vmatpush1.bf16.msra.mxu0 %v505
    %991 = vmatprep.subr.bf16.mxu0 0
    %992 = vmatpush1.bf16.msra.mxu0 %v504
    %993 = vmatprep.subr.bf16.mxu0 0
    %994 = vmatpush1.bf16.msra.mxu0 %v503
    %995 = vmatprep.subr.bf16.mxu0 0
    %996 = vmatpush1.bf16.msra.mxu0 %v502
    %997 = vmatprep.subr.bf16.mxu0 0
    %998 = vmatpush1.bf16.msra.mxu0 %v501
    %999 = vmatprep.subr.bf16.mxu0 0
    %1000 = vmatpush1.bf16.msra.mxu0 %v500
    %1001 = vmatprep.subr.bf16.mxu0 0
    %1002 = vmatpush1.bf16.msra.mxu0 %v499
    %1003 = vmatprep.subr.bf16.mxu0 0
    %1004 = vmatpush2.bf16.msra.mxu0 0
    %1005 = vmatprep.subr.bf16.mxu0 0
    %1006 = vmatpush2.bf16.msra.mxu0 0
    %1007 = vmatprep.subr.bf16.mxu0 0
    %1008 = vmatpush2.bf16.msra.mxu0 0
    %1009 = vmatprep.subr.bf16.mxu0 0
    %1010 = vmatpush2.bf16.msra.mxu0 0
    %1011 = vmatprep.subr.bf16.mxu0 0
    %1012 = vmatpush2.bf16.msra.mxu0 0
    %1013 = vmatprep.subr.bf16.mxu0 0
    %1014 = vmatpush2.bf16.msra.mxu0 0
    %1015 = vmatprep.subr.bf16.mxu0 0
    %1016 = vmatpush2.bf16.msra.mxu0 0
    %1017 = vmatprep.subr.bf16.mxu0 0
    %1018 = vmatpush2.bf16.msra.mxu0 0
    %1019 = vmatprep.mubr.bf16.mxu0 0
    %1020 = vmatmul.mubr.bf16.gmra.mxu0 %v986
    %v1021 = vpop.f32.mrf.mxu0
    %v1022 = vadd.f32 0.0, %v1021
    %v1023 = vpop.f32.mrf.mxu0
    %v1024 = vpop.f32.mrf.mxu0
    %v1025 = vpop.f32.mrf.mxu0
    %1026 = vdwg.mxu0
    %1027 = vset.pattern.permute.xlu0 2
    %1028 = vperm.xlu0 %1027, %v170
    %v1029 = vpop.permute.xlu0 %1028
    %v1031 = vmul.f32 %v1029, %v465
    %v1032 = vadd.f32 %v892, %v1022
    %v1033 = vpack.c.bf16 %v1032, %v1032
    %1034 = vmatprep.subr.bf16.mxu0 0
    %1035 = vmatpush1.bf16.msra.mxu0 %v595
    %1036 = vmatprep.subr.bf16.mxu0 0
    %1037 = vmatpush1.bf16.msra.mxu0 %v594
    %1038 = vmatprep.subr.bf16.mxu0 0
    %1039 = vmatpush1.bf16.msra.mxu0 %v593
    %1040 = vmatprep.subr.bf16.mxu0 0
    %1041 = vmatpush1.bf16.msra.mxu0 %v592
    %1042 = vmatprep.subr.bf16.mxu0 0
    %1043 = vmatpush1.bf16.msra.mxu0 %v591
    %1044 = vmatprep.subr.bf16.mxu0 0
    %1045 = vmatpush1.bf16.msra.mxu0 %v590
    %1046 = vmatprep.subr.bf16.mxu0 0
    %1047 = vmatpush1.bf16.msra.mxu0 %v589
    %1048 = vmatprep.subr.bf16.mxu0 0
    %1049 = vmatpush1.bf16.msra.mxu0 %v588
    %1050 = vmatprep.subr.bf16.mxu0 0
    %1051 = vmatpush2.bf16.msra.mxu0 0
    %1052 = vmatprep.subr.bf16.mxu0 0
    %1053 = vmatpush2.bf16.msra.mxu0 0
    %1054 = vmatprep.subr.bf16.mxu0 0
    %1055 = vmatpush2.bf16.msra.mxu0 0
    %1056 = vmatprep.subr.bf16.mxu0 0
    %1057 = vmatpush2.bf16.msra.mxu0 0
    %1058 = vmatprep.subr.bf16.mxu0 0
    %1059 = vmatpush2.bf16.msra.mxu0 0
    %1060 = vmatprep.subr.bf16.mxu0 0
    %1061 = vmatpush2.bf16.msra.mxu0 0
    %1062 = vmatprep.subr.bf16.mxu0 0
    %1063 = vmatpush2.bf16.msra.mxu0 0
    %1064 = vmatprep.subr.bf16.mxu0 0
    %1065 = vmatpush2.bf16.msra.mxu0 0
    %1066 = vmatprep.mubr.bf16.mxu0 0
    %1067 = vmatmul.mubr.bf16.gmra.mxu0 %v1033
    %v1068 = vpop.f32.mrf.mxu0
    %v1069 = vadd.f32 %v1031, %v1068
    %v1070 = vpop.f32.mrf.mxu0
    %v1071 = vpop.f32.mrf.mxu0
    %v1072 = vpop.f32.mrf.mxu0
    %1073 = vdwg.mxu0
    %v1074 = vadd.f32 %v1069, %v647
    %v1075 = vxor.u32 %v1074, 2147483648
    %v1076 = vmul.f32 %v1075, 1.442695
    %v1077 = vpow.pop %v1076
    %v1078 = vadd.f32 %v1077, 1.0
    %v1079 = vrcp.pop %v1078
    %v1080 = vmul.f32 1.0, %v1079
    %v1081 = vtanh.pop %v1074
    %v1082 = vmul.f32 %v1080, %v892
    %1084 = vrot.lane.b32.xlu0 %v1081, 64
    %v1085 = vpop.permute.xlu0 %1084
    %v1087 = vmul.f32 %v1080, %v1085
    %1089 = vrot.lane.b32.xlu0 %v1087, 32
    %v1090 = vpop.permute.xlu0 %1089
    %v1092 = vadd.f32 %v1082, %v1090
    %v1093 = vtanh.pop %v1092
    %1095 = vrot.lane.b32.xlu0 %v1093, 64
    %v1096 = vpop.permute.xlu0 %1095
    %v1098 = vmul.f32 %v1080, %v1096
    %1100 = vrot.lane.b32.xlu0 %v1098, 32
    %v1101 = vpop.permute.xlu0 %1100
    %v1103 = vsel %vm677, %v1101, %v1092
    %v1104 = vsel %vm679, %v1103, 0.0
    %v1105 = vpack.c.bf16 %v1104, %v1104
    %1106 = vmatprep.subr.bf16.mxu0 0
    %1107 = vmatpush1.bf16.msra.mxu0 %v303
    %1108 = vmatprep.subr.bf16.mxu0 0
    %1109 = vmatpush1.bf16.msra.mxu0 %v302
    %1110 = vmatprep.subr.bf16.mxu0 0
    %1111 = vmatpush1.bf16.msra.mxu0 %v301
    %1112 = vmatprep.subr.bf16.mxu0 0
    %1113 = vmatpush1.bf16.msra.mxu0 %v300
    %1114 = vmatprep.subr.bf16.mxu0 0
    %1115 = vmatpush1.bf16.msra.mxu0 %v299
    %1116 = vmatprep.subr.bf16.mxu0 0
    %1117 = vmatpush1.bf16.msra.mxu0 %v298
    %1118 = vmatprep.subr.bf16.mxu0 0
    %1119 = vmatpush1.bf16.msra.mxu0 %v297
    %1120 = vmatprep.subr.bf16.mxu0 0
    %1121 = vmatpush1.bf16.msra.mxu0 %v296
    %1122 = vmatprep.subr.bf16.mxu0 0
    %1123 = vmatpush2.bf16.msra.mxu0 0
    %1124 = vmatprep.subr.bf16.mxu0 0
    %1125 = vmatpush2.bf16.msra.mxu0 0
    %1126 = vmatprep.subr.bf16.mxu0 0
    %1127 = vmatpush2.bf16.msra.mxu0 0
    %1128 = vmatprep.subr.bf16.mxu0 0
    %1129 = vmatpush2.bf16.msra.mxu0 0
    %1130 = vmatprep.subr.bf16.mxu0 0
    %1131 = vmatpush2.bf16.msra.mxu0 0
    %1132 = vmatprep.subr.bf16.mxu0 0
    %1133 = vmatpush2.bf16.msra.mxu0 0
    %1134 = vmatprep.subr.bf16.mxu0 0
    %1135 = vmatpush2.bf16.msra.mxu0 0
    %1136 = vmatprep.subr.bf16.mxu0 0
    %1137 = vmatpush2.bf16.msra.mxu0 0
    %1138 = vmatprep.mubr.bf16.mxu0 0
    %1139 = vmatmul.mubr.bf16.gmra.mxu0 %v1105
    %v1140 = vpop.f32.mrf.mxu0
    %v1141 = vadd.f32 %v259, %v1140
    %v1142 = vpop.f32.mrf.mxu0
    %v1143 = vpop.f32.mrf.mxu0
    %v1144 = vpop.f32.mrf.mxu0
    %1145 = vdwg.mxu0
    %v1146 = vtanh.pop %v1141
    %v1147 = vpack.c.bf16 %v1146, %v1146
    %1148 = vmatprep.subr.bf16.mxu0 0
    %1149 = vmatpush1.bf16.msra.mxu0 %v397
    %1150 = vmatprep.subr.bf16.mxu0 0
    %1151 = vmatpush1.bf16.msra.mxu0 %v396
    %1152 = vmatprep.subr.bf16.mxu0 0
    %1153 = vmatpush1.bf16.msra.mxu0 %v395
    %1154 = vmatprep.subr.bf16.mxu0 0
    %1155 = vmatpush1.bf16.msra.mxu0 %v394
    %1156 = vmatprep.subr.bf16.mxu0 0
    %1157 = vmatpush1.bf16.msra.mxu0 %v393
    %1158 = vmatprep.subr.bf16.mxu0 0
    %1159 = vmatpush1.bf16.msra.mxu0 %v392
    %1160 = vmatprep.subr.bf16.mxu0 0
    %1161 = vmatpush1.bf16.msra.mxu0 %v391
    %1162 = vmatprep.subr.bf16.mxu0 0
    %1163 = vmatpush1.bf16.msra.mxu0 %v390
    %1164 = vmatprep.subr.bf16.mxu0 0
    %1165 = vmatpush2.bf16.msra.mxu0 0
    %1166 = vmatprep.subr.bf16.mxu0 0
    %1167 = vmatpush2.bf16.msra.mxu0 0
    %1168 = vmatprep.subr.bf16.mxu0 0
    %1169 = vmatpush2.bf16.msra.mxu0 0
    %1170 = vmatprep.subr.bf16.mxu0 0
    %1171 = vmatpush2.bf16.msra.mxu0 0
    %1172 = vmatprep.subr.bf16.mxu0 0
    %1173 = vmatpush2.bf16.msra.mxu0 0
    %1174 = vmatprep.subr.bf16.mxu0 0
    %1175 = vmatpush2.bf16.msra.mxu0 0
    %1176 = vmatprep.subr.bf16.mxu0 0
    %1177 = vmatpush2.bf16.msra.mxu0 0
    %1178 = vmatprep.subr.bf16.mxu0 0
    %1179 = vmatpush2.bf16.msra.mxu0 0
    %1180 = vmatprep.mubr.bf16.mxu0 0
    %1181 = vmatmul.mubr.bf16.gmra.mxu0 %v1147
    %v1182 = vpop.f32.mrf.mxu0
    %v1183 = vadd.f32 %v357, %v1182
    %v1184 = vpop.f32.mrf.mxu0
    %v1185 = vpop.f32.mrf.mxu0
    %v1186 = vpop.f32.mrf.mxu0
    %1187 = vdwg.mxu0
    %1188 = vmax.xlane.f32.xlu0 %v1183
    %v1189 = vpop.xlane.xlu0 %1188
    %v1190 = vsub.f32 %v1183, %v1189
    %v1191 = vmul.f32 %v1190, 1.442695
    %v1192 = vpow.pop %v1191
    %1193 = vadd.xlane.f32.xlu0 %v1192
    %v1194 = vpop.xlane.xlu0 %1193
    %v1195 = vrcp.pop %v1194
    %v1196 = vmul.f32 %v1192, %v1195
    %v1197 = vmul.f32 %v1196, %v169
    %v1198 = vpack.c.bf16 %v1197, %v1197
    %1199 = vmatprep.subr.bf16.mxu0 0
    %1200 = vmatpush1.bf16.msra.mxu0 %v506
    %1201 = vmatprep.subr.bf16.mxu0 0
    %1202 = vmatpush1.bf16.msra.mxu0 %v505
    %1203 = vmatprep.subr.bf16.mxu0 0
    %1204 = vmatpush1.bf16.msra.mxu0 %v504
    %1205 = vmatprep.subr.bf16.mxu0 0
    %1206 = vmatpush1.bf16.msra.mxu0 %v503
    %1207 = vmatprep.subr.bf16.mxu0 0
    %1208 = vmatpush1.bf16.msra.mxu0 %v502
    %1209 = vmatprep.subr.bf16.mxu0 0
    %1210 = vmatpush1.bf16.msra.mxu0 %v501
    %1211 = vmatprep.subr.bf16.mxu0 0
    %1212 = vmatpush1.bf16.msra.mxu0 %v500
    %1213 = vmatprep.subr.bf16.mxu0 0
    %1214 = vmatpush1.bf16.msra.mxu0 %v499
    %1215 = vmatprep.subr.bf16.mxu0 0
    %1216 = vmatpush2.bf16.msra.mxu0 0
    %1217 = vmatprep.subr.bf16.mxu0 0
    %1218 = vmatpush2.bf16.msra.mxu0 0
    %1219 = vmatprep.subr.bf16.mxu0 0
    %1220 = vmatpush2.bf16.msra.mxu0 0
    %1221 = vmatprep.subr.bf16.mxu0 0
    %1222 = vmatpush2.bf16.msra.mxu0 0
    %1223 = vmatprep.subr.bf16.mxu0 0
    %1224 = vmatpush2.bf16.msra.mxu0 0
    %1225 = vmatprep.subr.bf16.mxu0 0
    %1226 = vmatpush2.bf16.msra.mxu0 0
    %1227 = vmatprep.subr.bf16.mxu0 0
    %1228 = vmatpush2.bf16.msra.mxu0 0
    %1229 = vmatprep.subr.bf16.mxu0 0
    %1230 = vmatpush2.bf16.msra.mxu0 0
    %1231 = vmatprep.mubr.bf16.mxu0 0
    %1232 = vmatmul.mubr.bf16.gmra.mxu0 %v1198
    %v1233 = vpop.f32.mrf.mxu0
    %v1234 = vadd.f32 0.0, %v1233
    %v1235 = vpop.f32.mrf.mxu0
    %v1236 = vpop.f32.mrf.mxu0
    %v1237 = vpop.f32.mrf.mxu0
    %1238 = vdwg.mxu0
    %1239 = vset.pattern.permute.xlu0 3
    %1240 = vperm.xlu0 %1239, %v170
    %v1241 = vpop.permute.xlu0 %1240
    %v1243 = vmul.f32 %v1241, %v465
    %v1244 = vadd.f32 %v1104, %v1234
    %v1245 = vpack.c.bf16 %v1244, %v1244
    %1246 = vmatprep.subr.bf16.mxu0 0
    %1247 = vmatpush1.bf16.msra.mxu0 %v595
    %1248 = vmatprep.subr.bf16.mxu0 0
    %1249 = vmatpush1.bf16.msra.mxu0 %v594
    %1250 = vmatprep.subr.bf16.mxu0 0
    %1251 = vmatpush1.bf16.msra.mxu0 %v593
    %1252 = vmatprep.subr.bf16.mxu0 0
    %1253 = vmatpush1.bf16.msra.mxu0 %v592
    %1254 = vmatprep.subr.bf16.mxu0 0
    %1255 = vmatpush1.bf16.msra.mxu0 %v591
    %1256 = vmatprep.subr.bf16.mxu0 0
    %1257 = vmatpush1.bf16.msra.mxu0 %v590
    %1258 = vmatprep.subr.bf16.mxu0 0
    %1259 = vmatpush1.bf16.msra.mxu0 %v589
    %1260 = vmatprep.subr.bf16.mxu0 0
    %1261 = vmatpush1.bf16.msra.mxu0 %v588
    %1262 = vmatprep.subr.bf16.mxu0 0
    %1263 = vmatpush2.bf16.msra.mxu0 0
    %1264 = vmatprep.subr.bf16.mxu0 0
    %1265 = vmatpush2.bf16.msra.mxu0 0
    %1266 = vmatprep.subr.bf16.mxu0 0
    %1267 = vmatpush2.bf16.msra.mxu0 0
    %1268 = vmatprep.subr.bf16.mxu0 0
    %1269 = vmatpush2.bf16.msra.mxu0 0
    %1270 = vmatprep.subr.bf16.mxu0 0
    %1271 = vmatpush2.bf16.msra.mxu0 0
    %1272 = vmatprep.subr.bf16.mxu0 0
    %1273 = vmatpush2.bf16.msra.mxu0 0
    %1274 = vmatprep.subr.bf16.mxu0 0
    %1275 = vmatpush2.bf16.msra.mxu0 0
    %1276 = vmatprep.subr.bf16.mxu0 0
    %1277 = vmatpush2.bf16.msra.mxu0 0
    %1278 = vmatprep.mubr.bf16.mxu0 0
    %1279 = vmatmul.mubr.bf16.gmra.mxu0 %v1245
    %v1280 = vpop.f32.mrf.mxu0
    %v1281 = vadd.f32 %v1243, %v1280
    %v1282 = vpop.f32.mrf.mxu0
    %v1283 = vpop.f32.mrf.mxu0
    %v1284 = vpop.f32.mrf.mxu0
    %1285 = vdwg.mxu0
    %v1286 = vadd.f32 %v1281, %v647
    %v1287 = vxor.u32 %v1286, 2147483648
    %v1288 = vmul.f32 %v1287, 1.442695
    %v1289 = vpow.pop %v1288
    %v1290 = vadd.f32 %v1289, 1.0
    %v1291 = vrcp.pop %v1290
    %v1292 = vmul.f32 1.0, %v1291
    %v1293 = vtanh.pop %v1286
    %v1294 = vmul.f32 %v1292, %v1104
    %1296 = vrot.lane.b32.xlu0 %v1293, 64
    %v1297 = vpop.permute.xlu0 %1296
    %v1299 = vmul.f32 %v1292, %v1297
    %1301 = vrot.lane.b32.xlu0 %v1299, 32
    %v1302 = vpop.permute.xlu0 %1301
    %v1304 = vadd.f32 %v1294, %v1302
    %v1305 = vtanh.pop %v1304
    %1307 = vrot.lane.b32.xlu0 %v1305, 64
    %v1308 = vpop.permute.xlu0 %1307
    %v1310 = vmul.f32 %v1292, %v1308
    %1312 = vrot.lane.b32.xlu0 %v1310, 32
    %v1313 = vpop.permute.xlu0 %1312
    %v1315 = vsel %vm677, %v1313, %v1304
    %v1316 = vsel %vm679, %v1315, 0.0
    %v1317 = vpack.c.bf16 %v1316, %v1316
    %1318 = vmatprep.subr.bf16.mxu0 0
    %1319 = vmatpush1.bf16.msra.mxu0 %v303
    %1320 = vmatprep.subr.bf16.mxu0 0
    %1321 = vmatpush1.bf16.msra.mxu0 %v302
    %1322 = vmatprep.subr.bf16.mxu0 0
    %1323 = vmatpush1.bf16.msra.mxu0 %v301
    %1324 = vmatprep.subr.bf16.mxu0 0
    %1325 = vmatpush1.bf16.msra.mxu0 %v300
    %1326 = vmatprep.subr.bf16.mxu0 0
    %1327 = vmatpush1.bf16.msra.mxu0 %v299
    %1328 = vmatprep.subr.bf16.mxu0 0
    %1329 = vmatpush1.bf16.msra.mxu0 %v298
    %1330 = vmatprep.subr.bf16.mxu0 0
    %1331 = vmatpush1.bf16.msra.mxu0 %v297
    %1332 = vmatprep.subr.bf16.mxu0 0
    %1333 = vmatpush1.bf16.msra.mxu0 %v296
    %1334 = vmatprep.subr.bf16.mxu0 0
    %1335 = vmatpush2.bf16.msra.mxu0 0
    %1336 = vmatprep.subr.bf16.mxu0 0
    %1337 = vmatpush2.bf16.msra.mxu0 0
    %1338 = vmatprep.subr.bf16.mxu0 0
    %1339 = vmatpush2.bf16.msra.mxu0 0
    %1340 = vmatprep.subr.bf16.mxu0 0
    %1341 = vmatpush2.bf16.msra.mxu0 0
    %1342 = vmatprep.subr.bf16.mxu0 0
    %1343 = vmatpush2.bf16.msra.mxu0 0
    %1344 = vmatprep.subr.bf16.mxu0 0
    %1345 = vmatpush2.bf16.msra.mxu0 0
    %1346 = vmatprep.subr.bf16.mxu0 0
    %1347 = vmatpush2.bf16.msra.mxu0 0
    %1348 = vmatprep.subr.bf16.mxu0 0
    %1349 = vmatpush2.bf16.msra.mxu0 0
    %1350 = vmatprep.mubr.bf16.mxu0 0
    %1351 = vmatmul.mubr.bf16.gmra.mxu0 %v1317
    %v1352 = vpop.f32.mrf.mxu0
    %v1353 = vadd.f32 %v259, %v1352
    %v1354 = vpop.f32.mrf.mxu0
    %v1355 = vpop.f32.mrf.mxu0
    %v1356 = vpop.f32.mrf.mxu0
    %1357 = vdwg.mxu0
    %v1358 = vtanh.pop %v1353
    %v1359 = vpack.c.bf16 %v1358, %v1358
    %1360 = vmatprep.subr.bf16.mxu0 0
    %1361 = vmatpush1.bf16.msra.mxu0 %v397
    %1362 = vmatprep.subr.bf16.mxu0 0
    %1363 = vmatpush1.bf16.msra.mxu0 %v396
    %1364 = vmatprep.subr.bf16.mxu0 0
    %1365 = vmatpush1.bf16.msra.mxu0 %v395
    %1366 = vmatprep.subr.bf16.mxu0 0
    %1367 = vmatpush1.bf16.msra.mxu0 %v394
    %1368 = vmatprep.subr.bf16.mxu0 0
    %1369 = vmatpush1.bf16.msra.mxu0 %v393
    %1370 = vmatprep.subr.bf16.mxu0 0
    %1371 = vmatpush1.bf16.msra.mxu0 %v392
    %1372 = vmatprep.subr.bf16.mxu0 0
    %1373 = vmatpush1.bf16.msra.mxu0 %v391
    %1374 = vmatprep.subr.bf16.mxu0 0
    %1375 = vmatpush1.bf16.msra.mxu0 %v390
    %1376 = vmatprep.subr.bf16.mxu0 0
    %1377 = vmatpush2.bf16.msra.mxu0 0
    %1378 = vmatprep.subr.bf16.mxu0 0
    %1379 = vmatpush2.bf16.msra.mxu0 0
    %1380 = vmatprep.subr.bf16.mxu0 0
    %1381 = vmatpush2.bf16.msra.mxu0 0
    %1382 = vmatprep.subr.bf16.mxu0 0
    %1383 = vmatpush2.bf16.msra.mxu0 0
    %1384 = vmatprep.subr.bf16.mxu0 0
    %1385 = vmatpush2.bf16.msra.mxu0 0
    %1386 = vmatprep.subr.bf16.mxu0 0
    %1387 = vmatpush2.bf16.msra.mxu0 0
    %1388 = vmatprep.subr.bf16.mxu0 0
    %1389 = vmatpush2.bf16.msra.mxu0 0
    %1390 = vmatprep.subr.bf16.mxu0 0
    %1391 = vmatpush2.bf16.msra.mxu0 0
    %1392 = vmatprep.mubr.bf16.mxu0 0
    %1393 = vmatmul.mubr.bf16.gmra.mxu0 %v1359
    %v1394 = vpop.f32.mrf.mxu0
    %v1395 = vadd.f32 %v357, %v1394
    %v1396 = vpop.f32.mrf.mxu0
    %v1397 = vpop.f32.mrf.mxu0
    %v1398 = vpop.f32.mrf.mxu0
    %1399 = vdwg.mxu0
    %1400 = vmax.xlane.f32.xlu0 %v1395
    %v1401 = vpop.xlane.xlu0 %1400
    %v1402 = vsub.f32 %v1395, %v1401
    %v1403 = vmul.f32 %v1402, 1.442695
    %v1404 = vpow.pop %v1403
    %1405 = vadd.xlane.f32.xlu0 %v1404
    %v1406 = vpop.xlane.xlu0 %1405
    %v1407 = vrcp.pop %v1406
    %v1408 = vmul.f32 %v1404, %v1407
    %v1409 = vmul.f32 %v1408, %v169
    %v1410 = vpack.c.bf16 %v1409, %v1409
    %1411 = vmatprep.subr.bf16.mxu0 0
    %1412 = vmatpush1.bf16.msra.mxu0 %v506
    %1413 = vmatprep.subr.bf16.mxu0 0
    %1414 = vmatpush1.bf16.msra.mxu0 %v505
    %1415 = vmatprep.subr.bf16.mxu0 0
    %1416 = vmatpush1.bf16.msra.mxu0 %v504
    %1417 = vmatprep.subr.bf16.mxu0 0
    %1418 = vmatpush1.bf16.msra.mxu0 %v503
    %1419 = vmatprep.subr.bf16.mxu0 0
    %1420 = vmatpush1.bf16.msra.mxu0 %v502
    %1421 = vmatprep.subr.bf16.mxu0 0
    %1422 = vmatpush1.bf16.msra.mxu0 %v501
    %1423 = vmatprep.subr.bf16.mxu0 0
    %1424 = vmatpush1.bf16.msra.mxu0 %v500
    %1425 = vmatprep.subr.bf16.mxu0 0
    %1426 = vmatpush1.bf16.msra.mxu0 %v499
    %1427 = vmatprep.subr.bf16.mxu0 0
    %1428 = vmatpush2.bf16.msra.mxu0 0
    %1429 = vmatprep.subr.bf16.mxu0 0
    %1430 = vmatpush2.bf16.msra.mxu0 0
    %1431 = vmatprep.subr.bf16.mxu0 0
    %1432 = vmatpush2.bf16.msra.mxu0 0
    %1433 = vmatprep.subr.bf16.mxu0 0
    %1434 = vmatpush2.bf16.msra.mxu0 0
    %1435 = vmatprep.subr.bf16.mxu0 0
    %1436 = vmatpush2.bf16.msra.mxu0 0
    %1437 = vmatprep.subr.bf16.mxu0 0
    %1438 = vmatpush2.bf16.msra.mxu0 0
    %1439 = vmatprep.subr.bf16.mxu0 0
    %1440 = vmatpush2.bf16.msra.mxu0 0
    %1441 = vmatprep.subr.bf16.mxu0 0
    %1442 = vmatpush2.bf16.msra.mxu0 0
    %1443 = vmatprep.mubr.bf16.mxu0 0
    %1444 = vmatmul.mubr.bf16.gmra.mxu0 %v1410
    %v1445 = vpop.f32.mrf.mxu0
    %v1446 = vadd.f32 0.0, %v1445
    %v1447 = vpop.f32.mrf.mxu0
    %v1448 = vpop.f32.mrf.mxu0
    %v1449 = vpop.f32.mrf.mxu0
    %1450 = vdwg.mxu0
    %1451 = vset.pattern.permute.xlu0 4
    %1452 = vperm.xlu0 %1451, %v170
    %v1453 = vpop.permute.xlu0 %1452
    %v1455 = vmul.f32 %v1453, %v465
    %v1456 = vadd.f32 %v1316, %v1446
    %v1457 = vpack.c.bf16 %v1456, %v1456
    %1458 = vmatprep.subr.bf16.mxu0 0
    %1459 = vmatpush1.bf16.msra.mxu0 %v595
    %1460 = vmatprep.subr.bf16.mxu0 0
    %1461 = vmatpush1.bf16.msra.mxu0 %v594
    %1462 = vmatprep.subr.bf16.mxu0 0
    %1463 = vmatpush1.bf16.msra.mxu0 %v593
    %1464 = vmatprep.subr.bf16.mxu0 0
    %1465 = vmatpush1.bf16.msra.mxu0 %v592
    %1466 = vmatprep.subr.bf16.mxu0 0
    %1467 = vmatpush1.bf16.msra.mxu0 %v591
    %1468 = vmatprep.subr.bf16.mxu0 0
    %1469 = vmatpush1.bf16.msra.mxu0 %v590
    %1470 = vmatprep.subr.bf16.mxu0 0
    %1471 = vmatpush1.bf16.msra.mxu0 %v589
    %1472 = vmatprep.subr.bf16.mxu0 0
    %1473 = vmatpush1.bf16.msra.mxu0 %v588
    %1474 = vmatprep.subr.bf16.mxu0 0
    %1475 = vmatpush2.bf16.msra.mxu0 0
    %1476 = vmatprep.subr.bf16.mxu0 0
    %1477 = vmatpush2.bf16.msra.mxu0 0
    %1478 = vmatprep.subr.bf16.mxu0 0
    %1479 = vmatpush2.bf16.msra.mxu0 0
    %1480 = vmatprep.subr.bf16.mxu0 0
    %1481 = vmatpush2.bf16.msra.mxu0 0
    %1482 = vmatprep.subr.bf16.mxu0 0
    %1483 = vmatpush2.bf16.msra.mxu0 0
    %1484 = vmatprep.subr.bf16.mxu0 0
    %1485 = vmatpush2.bf16.msra.mxu0 0
    %1486 = vmatprep.subr.bf16.mxu0 0
    %1487 = vmatpush2.bf16.msra.mxu0 0
    %1488 = vmatprep.subr.bf16.mxu0 0
    %1489 = vmatpush2.bf16.msra.mxu0 0
    %1490 = vmatprep.mubr.bf16.mxu0 0
    %1491 = vmatmul.mubr.bf16.gmra.mxu0 %v1457
    %v1492 = vpop.f32.mrf.mxu0
    %v1493 = vadd.f32 %v1455, %v1492
    %v1494 = vpop.f32.mrf.mxu0
    %v1495 = vpop.f32.mrf.mxu0
    %v1496 = vpop.f32.mrf.mxu0
    %1497 = vdwg.mxu0
    %v1498 = vadd.f32 %v1493, %v647
    %v1499 = vxor.u32 %v1498, 2147483648
    %v1500 = vmul.f32 %v1499, 1.442695
    %v1501 = vpow.pop %v1500
    %v1502 = vadd.f32 %v1501, 1.0
    %v1503 = vrcp.pop %v1502
    %v1504 = vmul.f32 1.0, %v1503
    %v1505 = vtanh.pop %v1498
    %v1506 = vmul.f32 %v1504, %v1316
    %1508 = vrot.lane.b32.xlu0 %v1505, 64
    %v1509 = vpop.permute.xlu0 %1508
    %v1511 = vmul.f32 %v1504, %v1509
    %1513 = vrot.lane.b32.xlu0 %v1511, 32
    %v1514 = vpop.permute.xlu0 %1513
    %v1516 = vadd.f32 %v1506, %v1514
    %v1517 = vtanh.pop %v1516
    %1519 = vrot.lane.b32.xlu0 %v1517, 64
    %v1520 = vpop.permute.xlu0 %1519
    %v1522 = vmul.f32 %v1504, %v1520
    %1524 = vrot.lane.b32.xlu0 %v1522, 32
    %v1525 = vpop.permute.xlu0 %1524
    %v1527 = vsel %vm677, %v1525, %v1516
    %v1528 = vsel %vm679, %v1527, 0.0
    %v1529 = vpack.c.bf16 %v1528, %v1528
    %1530 = vmatprep.subr.bf16.mxu0 0
    %1531 = vmatpush1.bf16.msra.mxu0 %v303
    %1532 = vmatprep.subr.bf16.mxu0 0
    %1533 = vmatpush1.bf16.msra.mxu0 %v302
    %1534 = vmatprep.subr.bf16.mxu0 0
    %1535 = vmatpush1.bf16.msra.mxu0 %v301
    %1536 = vmatprep.subr.bf16.mxu0 0
    %1537 = vmatpush1.bf16.msra.mxu0 %v300
    %1538 = vmatprep.subr.bf16.mxu0 0
    %1539 = vmatpush1.bf16.msra.mxu0 %v299
    %1540 = vmatprep.subr.bf16.mxu0 0
    %1541 = vmatpush1.bf16.msra.mxu0 %v298
    %1542 = vmatprep.subr.bf16.mxu0 0
    %1543 = vmatpush1.bf16.msra.mxu0 %v297
    %1544 = vmatprep.subr.bf16.mxu0 0
    %1545 = vmatpush1.bf16.msra.mxu0 %v296
    %1546 = vmatprep.subr.bf16.mxu0 0
    %1547 = vmatpush2.bf16.msra.mxu0 0
    %1548 = vmatprep.subr.bf16.mxu0 0
    %1549 = vmatpush2.bf16.msra.mxu0 0
    %1550 = vmatprep.subr.bf16.mxu0 0
    %1551 = vmatpush2.bf16.msra.mxu0 0
    %1552 = vmatprep.subr.bf16.mxu0 0
    %1553 = vmatpush2.bf16.msra.mxu0 0
    %1554 = vmatprep.subr.bf16.mxu0 0
    %1555 = vmatpush2.bf16.msra.mxu0 0
    %1556 = vmatprep.subr.bf16.mxu0 0
    %1557 = vmatpush2.bf16.msra.mxu0 0
    %1558 = vmatprep.subr.bf16.mxu0 0
    %1559 = vmatpush2.bf16.msra.mxu0 0
    %1560 = vmatprep.subr.bf16.mxu0 0
    %1561 = vmatpush2.bf16.msra.mxu0 0
    %1562 = vmatprep.mubr.bf16.mxu0 0
    %1563 = vmatmul.mubr.bf16.gmra.mxu0 %v1529
    %v1564 = vpop.f32.mrf.mxu0
    %v1565 = vadd.f32 %v259, %v1564
    %v1566 = vpop.f32.mrf.mxu0
    %v1567 = vpop.f32.mrf.mxu0
    %v1568 = vpop.f32.mrf.mxu0
    %1569 = vdwg.mxu0
    %v1570 = vtanh.pop %v1565
    %v1571 = vpack.c.bf16 %v1570, %v1570
    %1572 = vmatprep.subr.bf16.mxu0 0
    %1573 = vmatpush1.bf16.msra.mxu0 %v397
    %1574 = vmatprep.subr.bf16.mxu0 0
    %1575 = vmatpush1.bf16.msra.mxu0 %v396
    %1576 = vmatprep.subr.bf16.mxu0 0
    %1577 = vmatpush1.bf16.msra.mxu0 %v395
    %1578 = vmatprep.subr.bf16.mxu0 0
    %1579 = vmatpush1.bf16.msra.mxu0 %v394
    %1580 = vmatprep.subr.bf16.mxu0 0
    %1581 = vmatpush1.bf16.msra.mxu0 %v393
    %1582 = vmatprep.subr.bf16.mxu0 0
    %1583 = vmatpush1.bf16.msra.mxu0 %v392
    %1584 = vmatprep.subr.bf16.mxu0 0
    %1585 = vmatpush1.bf16.msra.mxu0 %v391
    %1586 = vmatprep.subr.bf16.mxu0 0
    %1587 = vmatpush1.bf16.msra.mxu0 %v390
    %1588 = vmatprep.subr.bf16.mxu0 0
    %1589 = vmatpush2.bf16.msra.mxu0 0
    %1590 = vmatprep.subr.bf16.mxu0 0
    %1591 = vmatpush2.bf16.msra.mxu0 0
    %1592 = vmatprep.subr.bf16.mxu0 0
    %1593 = vmatpush2.bf16.msra.mxu0 0
    %1594 = vmatprep.subr.bf16.mxu0 0
    %1595 = vmatpush2.bf16.msra.mxu0 0
    %1596 = vmatprep.subr.bf16.mxu0 0
    %1597 = vmatpush2.bf16.msra.mxu0 0
    %1598 = vmatprep.subr.bf16.mxu0 0
    %1599 = vmatpush2.bf16.msra.mxu0 0
    %1600 = vmatprep.subr.bf16.mxu0 0
    %1601 = vmatpush2.bf16.msra.mxu0 0
    %1602 = vmatprep.subr.bf16.mxu0 0
    %1603 = vmatpush2.bf16.msra.mxu0 0
    %1604 = vmatprep.mubr.bf16.mxu0 0
    %1605 = vmatmul.mubr.bf16.gmra.mxu0 %v1571
    %v1606 = vpop.f32.mrf.mxu0
    %v1607 = vadd.f32 %v357, %v1606
    %v1608 = vpop.f32.mrf.mxu0
    %v1609 = vpop.f32.mrf.mxu0
    %v1610 = vpop.f32.mrf.mxu0
    %1611 = vdwg.mxu0
    %1612 = vmax.xlane.f32.xlu0 %v1607
    %v1613 = vpop.xlane.xlu0 %1612
    %v1614 = vsub.f32 %v1607, %v1613
    %v1615 = vmul.f32 %v1614, 1.442695
    %v1616 = vpow.pop %v1615
    %1617 = vadd.xlane.f32.xlu0 %v1616
    %v1618 = vpop.xlane.xlu0 %1617
    %v1619 = vrcp.pop %v1618
    %v1620 = vmul.f32 %v1616, %v1619
    %v1621 = vmul.f32 %v1620, %v169
    %v1622 = vpack.c.bf16 %v1621, %v1621
    %1623 = vmatprep.subr.bf16.mxu0 0
    %1624 = vmatpush1.bf16.msra.mxu0 %v506
    %1625 = vmatprep.subr.bf16.mxu0 0
    %1626 = vmatpush1.bf16.msra.mxu0 %v505
    %1627 = vmatprep.subr.bf16.mxu0 0
    %1628 = vmatpush1.bf16.msra.mxu0 %v504
    %1629 = vmatprep.subr.bf16.mxu0 0
    %1630 = vmatpush1.bf16.msra.mxu0 %v503
    %1631 = vmatprep.subr.bf16.mxu0 0
    %1632 = vmatpush1.bf16.msra.mxu0 %v502
    %1633 = vmatprep.subr.bf16.mxu0 0
    %1634 = vmatpush1.bf16.msra.mxu0 %v501
    %1635 = vmatprep.subr.bf16.mxu0 0
    %1636 = vmatpush1.bf16.msra.mxu0 %v500
    %1637 = vmatprep.subr.bf16.mxu0 0
    %1638 = vmatpush1.bf16.msra.mxu0 %v499
    %1639 = vmatprep.subr.bf16.mxu0 0
    %1640 = vmatpush2.bf16.msra.mxu0 0
    %1641 = vmatprep.subr.bf16.mxu0 0
    %1642 = vmatpush2.bf16.msra.mxu0 0
    %1643 = vmatprep.subr.bf16.mxu0 0
    %1644 = vmatpush2.bf16.msra.mxu0 0
    %1645 = vmatprep.subr.bf16.mxu0 0
    %1646 = vmatpush2.bf16.msra.mxu0 0
    %1647 = vmatprep.subr.bf16.mxu0 0
    %1648 = vmatpush2.bf16.msra.mxu0 0
    %1649 = vmatprep.subr.bf16.mxu0 0
    %1650 = vmatpush2.bf16.msra.mxu0 0
    %1651 = vmatprep.subr.bf16.mxu0 0
    %1652 = vmatpush2.bf16.msra.mxu0 0
    %1653 = vmatprep.subr.bf16.mxu0 0
    %1654 = vmatpush2.bf16.msra.mxu0 0
    %1655 = vmatprep.mubr.bf16.mxu0 0
    %1656 = vmatmul.mubr.bf16.gmra.mxu0 %v1622
    %v1657 = vpop.f32.mrf.mxu0
    %v1658 = vadd.f32 0.0, %v1657
    %v1659 = vpop.f32.mrf.mxu0
    %v1660 = vpop.f32.mrf.mxu0
    %v1661 = vpop.f32.mrf.mxu0
    %1662 = vdwg.mxu0
    %1663 = vset.pattern.permute.xlu0 5
    %1664 = vperm.xlu0 %1663, %v170
    %v1665 = vpop.permute.xlu0 %1664
    %v1667 = vmul.f32 %v1665, %v465
    %v1668 = vadd.f32 %v1528, %v1658
    %v1669 = vpack.c.bf16 %v1668, %v1668
    %1670 = vmatprep.subr.bf16.mxu0 0
    %1671 = vmatpush1.bf16.msra.mxu0 %v595
    %1672 = vmatprep.subr.bf16.mxu0 0
    %1673 = vmatpush1.bf16.msra.mxu0 %v594
    %1674 = vmatprep.subr.bf16.mxu0 0
    %1675 = vmatpush1.bf16.msra.mxu0 %v593
    %1676 = vmatprep.subr.bf16.mxu0 0
    %1677 = vmatpush1.bf16.msra.mxu0 %v592
    %1678 = vmatprep.subr.bf16.mxu0 0
    %1679 = vmatpush1.bf16.msra.mxu0 %v591
    %1680 = vmatprep.subr.bf16.mxu0 0
    %1681 = vmatpush1.bf16.msra.mxu0 %v590
    %1682 = vmatprep.subr.bf16.mxu0 0
    %1683 = vmatpush1.bf16.msra.mxu0 %v589
    %1684 = vmatprep.subr.bf16.mxu0 0
    %1685 = vmatpush1.bf16.msra.mxu0 %v588
    %1686 = vmatprep.subr.bf16.mxu0 0
    %1687 = vmatpush2.bf16.msra.mxu0 0
    %1688 = vmatprep.subr.bf16.mxu0 0
    %1689 = vmatpush2.bf16.msra.mxu0 0
    %1690 = vmatprep.subr.bf16.mxu0 0
    %1691 = vmatpush2.bf16.msra.mxu0 0
    %1692 = vmatprep.subr.bf16.mxu0 0
    %1693 = vmatpush2.bf16.msra.mxu0 0
    %1694 = vmatprep.subr.bf16.mxu0 0
    %1695 = vmatpush2.bf16.msra.mxu0 0
    %1696 = vmatprep.subr.bf16.mxu0 0
    %1697 = vmatpush2.bf16.msra.mxu0 0
    %1698 = vmatprep.subr.bf16.mxu0 0
    %1699 = vmatpush2.bf16.msra.mxu0 0
    %1700 = vmatprep.subr.bf16.mxu0 0
    %1701 = vmatpush2.bf16.msra.mxu0 0
    %1702 = vmatprep.mubr.bf16.mxu0 0
    %1703 = vmatmul.mubr.bf16.gmra.mxu0 %v1669
    %v1704 = vpop.f32.mrf.mxu0
    %v1705 = vadd.f32 %v1667, %v1704
    %v1706 = vpop.f32.mrf.mxu0
    %v1707 = vpop.f32.mrf.mxu0
    %v1708 = vpop.f32.mrf.mxu0
    %1709 = vdwg.mxu0
    %v1710 = vadd.f32 %v1705, %v647
    %v1711 = vxor.u32 %v1710, 2147483648
    %v1712 = vmul.f32 %v1711, 1.442695
    %v1713 = vpow.pop %v1712
    %v1714 = vadd.f32 %v1713, 1.0
    %v1715 = vrcp.pop %v1714
    %v1716 = vmul.f32 1.0, %v1715
    %v1717 = vtanh.pop %v1710
    %v1718 = vmul.f32 %v1716, %v1528
    %1720 = vrot.lane.b32.xlu0 %v1717, 64
    %v1721 = vpop.permute.xlu0 %1720
    %v1723 = vmul.f32 %v1716, %v1721
    %1725 = vrot.lane.b32.xlu0 %v1723, 32
    %v1726 = vpop.permute.xlu0 %1725
    %v1728 = vadd.f32 %v1718, %v1726
    %v1729 = vtanh.pop %v1728
    %1731 = vrot.lane.b32.xlu0 %v1729, 64
    %v1732 = vpop.permute.xlu0 %1731
    %v1734 = vmul.f32 %v1716, %v1732
    %1736 = vrot.lane.b32.xlu0 %v1734, 32
    %v1737 = vpop.permute.xlu0 %1736
    %v1739 = vsel %vm677, %v1737, %v1728
    %v1740 = vsel %vm679, %v1739, 0.0
    %v1741 = vpack.c.bf16 %v1740, %v1740
    %1742 = vmatprep.subr.bf16.mxu0 0
    %1743 = vmatpush1.bf16.msra.mxu0 %v303
    %1744 = vmatprep.subr.bf16.mxu0 0
    %1745 = vmatpush1.bf16.msra.mxu0 %v302
    %1746 = vmatprep.subr.bf16.mxu0 0
    %1747 = vmatpush1.bf16.msra.mxu0 %v301
    %1748 = vmatprep.subr.bf16.mxu0 0
    %1749 = vmatpush1.bf16.msra.mxu0 %v300
    %1750 = vmatprep.subr.bf16.mxu0 0
    %1751 = vmatpush1.bf16.msra.mxu0 %v299
    %1752 = vmatprep.subr.bf16.mxu0 0
    %1753 = vmatpush1.bf16.msra.mxu0 %v298
    %1754 = vmatprep.subr.bf16.mxu0 0
    %1755 = vmatpush1.bf16.msra.mxu0 %v297
    %1756 = vmatprep.subr.bf16.mxu0 0
    %1757 = vmatpush1.bf16.msra.mxu0 %v296
    %1758 = vmatprep.subr.bf16.mxu0 0
    %1759 = vmatpush2.bf16.msra.mxu0 0
    %1760 = vmatprep.subr.bf16.mxu0 0
    %1761 = vmatpush2.bf16.msra.mxu0 0
    %1762 = vmatprep.subr.bf16.mxu0 0
    %1763 = vmatpush2.bf16.msra.mxu0 0
    %1764 = vmatprep.subr.bf16.mxu0 0
    %1765 = vmatpush2.bf16.msra.mxu0 0
    %1766 = vmatprep.subr.bf16.mxu0 0
    %1767 = vmatpush2.bf16.msra.mxu0 0
    %1768 = vmatprep.subr.bf16.mxu0 0
    %1769 = vmatpush2.bf16.msra.mxu0 0
    %1770 = vmatprep.subr.bf16.mxu0 0
    %1771 = vmatpush2.bf16.msra.mxu0 0
    %1772 = vmatprep.subr.bf16.mxu0 0
    %1773 = vmatpush2.bf16.msra.mxu0 0
    %1774 = vmatprep.mubr.bf16.mxu0 0
    %1775 = vmatmul.mubr.bf16.gmra.mxu0 %v1741
    %v1776 = vpop.f32.mrf.mxu0
    %v1777 = vadd.f32 %v259, %v1776
    %v1778 = vpop.f32.mrf.mxu0
    %v1779 = vpop.f32.mrf.mxu0
    %v1780 = vpop.f32.mrf.mxu0
    %1781 = vdwg.mxu0
    %v1782 = vtanh.pop %v1777
    %v1783 = vpack.c.bf16 %v1782, %v1782
    %1784 = vmatprep.subr.bf16.mxu0 0
    %1785 = vmatpush1.bf16.msra.mxu0 %v397
    %1786 = vmatprep.subr.bf16.mxu0 0
    %1787 = vmatpush1.bf16.msra.mxu0 %v396
    %1788 = vmatprep.subr.bf16.mxu0 0
    %1789 = vmatpush1.bf16.msra.mxu0 %v395
    %1790 = vmatprep.subr.bf16.mxu0 0
    %1791 = vmatpush1.bf16.msra.mxu0 %v394
    %1792 = vmatprep.subr.bf16.mxu0 0
    %1793 = vmatpush1.bf16.msra.mxu0 %v393
    %1794 = vmatprep.subr.bf16.mxu0 0
    %1795 = vmatpush1.bf16.msra.mxu0 %v392
    %1796 = vmatprep.subr.bf16.mxu0 0
    %1797 = vmatpush1.bf16.msra.mxu0 %v391
    %1798 = vmatprep.subr.bf16.mxu0 0
    %1799 = vmatpush1.bf16.msra.mxu0 %v390
    %1800 = vmatprep.subr.bf16.mxu0 0
    %1801 = vmatpush2.bf16.msra.mxu0 0
    %1802 = vmatprep.subr.bf16.mxu0 0
    %1803 = vmatpush2.bf16.msra.mxu0 0
    %1804 = vmatprep.subr.bf16.mxu0 0
    %1805 = vmatpush2.bf16.msra.mxu0 0
    %1806 = vmatprep.subr.bf16.mxu0 0
    %1807 = vmatpush2.bf16.msra.mxu0 0
    %1808 = vmatprep.subr.bf16.mxu0 0
    %1809 = vmatpush2.bf16.msra.mxu0 0
    %1810 = vmatprep.subr.bf16.mxu0 0
    %1811 = vmatpush2.bf16.msra.mxu0 0
    %1812 = vmatprep.subr.bf16.mxu0 0
    %1813 = vmatpush2.bf16.msra.mxu0 0
    %1814 = vmatprep.subr.bf16.mxu0 0
    %1815 = vmatpush2.bf16.msra.mxu0 0
    %1816 = vmatprep.mubr.bf16.mxu0 0
    %1817 = vmatmul.mubr.bf16.gmra.mxu0 %v1783
    %v1818 = vpop.f32.mrf.mxu0
    %v1819 = vadd.f32 %v357, %v1818
    %v1820 = vpop.f32.mrf.mxu0
    %v1821 = vpop.f32.mrf.mxu0
    %v1822 = vpop.f32.mrf.mxu0
    %1823 = vdwg.mxu0
    %1824 = vmax.xlane.f32.xlu0 %v1819
    %v1825 = vpop.xlane.xlu0 %1824
    %v1826 = vsub.f32 %v1819, %v1825
    %v1827 = vmul.f32 %v1826, 1.442695
    %v1828 = vpow.pop %v1827
    %1829 = vadd.xlane.f32.xlu0 %v1828
    %v1830 = vpop.xlane.xlu0 %1829
    %v1831 = vrcp.pop %v1830
    %v1832 = vmul.f32 %v1828, %v1831
    %v1833 = vmul.f32 %v1832, %v169
    %v1834 = vpack.c.bf16 %v1833, %v1833
    %1835 = vmatprep.subr.bf16.mxu0 0
    %1836 = vmatpush1.bf16.msra.mxu0 %v506
    %1837 = vmatprep.subr.bf16.mxu0 0
    %1838 = vmatpush1.bf16.msra.mxu0 %v505
    %1839 = vmatprep.subr.bf16.mxu0 0
    %1840 = vmatpush1.bf16.msra.mxu0 %v504
    %1841 = vmatprep.subr.bf16.mxu0 0
    %1842 = vmatpush1.bf16.msra.mxu0 %v503
    %1843 = vmatprep.subr.bf16.mxu0 0
    %1844 = vmatpush1.bf16.msra.mxu0 %v502
    %1845 = vmatprep.subr.bf16.mxu0 0
    %1846 = vmatpush1.bf16.msra.mxu0 %v501
    %1847 = vmatprep.subr.bf16.mxu0 0
    %1848 = vmatpush1.bf16.msra.mxu0 %v500
    %1849 = vmatprep.subr.bf16.mxu0 0
    %1850 = vmatpush1.bf16.msra.mxu0 %v499
    %1851 = vmatprep.subr.bf16.mxu0 0
    %1852 = vmatpush2.bf16.msra.mxu0 0
    %1853 = vmatprep.subr.bf16.mxu0 0
    %1854 = vmatpush2.bf16.msra.mxu0 0
    %1855 = vmatprep.subr.bf16.mxu0 0
    %1856 = vmatpush2.bf16.msra.mxu0 0
    %1857 = vmatprep.subr.bf16.mxu0 0
    %1858 = vmatpush2.bf16.msra.mxu0 0
    %1859 = vmatprep.subr.bf16.mxu0 0
    %1860 = vmatpush2.bf16.msra.mxu0 0
    %1861 = vmatprep.subr.bf16.mxu0 0
    %1862 = vmatpush2.bf16.msra.mxu0 0
    %1863 = vmatprep.subr.bf16.mxu0 0
    %1864 = vmatpush2.bf16.msra.mxu0 0
    %1865 = vmatprep.subr.bf16.mxu0 0
    %1866 = vmatpush2.bf16.msra.mxu0 0
    %1867 = vmatprep.mubr.bf16.mxu0 0
    %1868 = vmatmul.mubr.bf16.gmra.mxu0 %v1834
    %v1869 = vpop.f32.mrf.mxu0
    %v1870 = vadd.f32 0.0, %v1869
    %v1871 = vpop.f32.mrf.mxu0
    %v1872 = vpop.f32.mrf.mxu0
    %v1873 = vpop.f32.mrf.mxu0
    %1874 = vdwg.mxu0
    %1875 = vset.pattern.permute.xlu0 6
    %1876 = vperm.xlu0 %1875, %v170
    %v1877 = vpop.permute.xlu0 %1876
    %v1879 = vmul.f32 %v1877, %v465
    %v1880 = vadd.f32 %v1740, %v1870
    %v1881 = vpack.c.bf16 %v1880, %v1880
    %1882 = vmatprep.subr.bf16.mxu0 0
    %1883 = vmatpush1.bf16.msra.mxu0 %v595
    %1884 = vmatprep.subr.bf16.mxu0 0
    %1885 = vmatpush1.bf16.msra.mxu0 %v594
    %1886 = vmatprep.subr.bf16.mxu0 0
    %1887 = vmatpush1.bf16.msra.mxu0 %v593
    %1888 = vmatprep.subr.bf16.mxu0 0
    %1889 = vmatpush1.bf16.msra.mxu0 %v592
    %1890 = vmatprep.subr.bf16.mxu0 0
    %1891 = vmatpush1.bf16.msra.mxu0 %v591
    %1892 = vmatprep.subr.bf16.mxu0 0
    %1893 = vmatpush1.bf16.msra.mxu0 %v590
    %1894 = vmatprep.subr.bf16.mxu0 0
    %1895 = vmatpush1.bf16.msra.mxu0 %v589
    %1896 = vmatprep.subr.bf16.mxu0 0
    %1897 = vmatpush1.bf16.msra.mxu0 %v588
    %1898 = vmatprep.subr.bf16.mxu0 0
    %1899 = vmatpush2.bf16.msra.mxu0 0
    %1900 = vmatprep.subr.bf16.mxu0 0
    %1901 = vmatpush2.bf16.msra.mxu0 0
    %1902 = vmatprep.subr.bf16.mxu0 0
    %1903 = vmatpush2.bf16.msra.mxu0 0
    %1904 = vmatprep.subr.bf16.mxu0 0
    %1905 = vmatpush2.bf16.msra.mxu0 0
    %1906 = vmatprep.subr.bf16.mxu0 0
    %1907 = vmatpush2.bf16.msra.mxu0 0
    %1908 = vmatprep.subr.bf16.mxu0 0
    %1909 = vmatpush2.bf16.msra.mxu0 0
    %1910 = vmatprep.subr.bf16.mxu0 0
    %1911 = vmatpush2.bf16.msra.mxu0 0
    %1912 = vmatprep.subr.bf16.mxu0 0
    %1913 = vmatpush2.bf16.msra.mxu0 0
    %1914 = vmatprep.mubr.bf16.mxu0 0
    %1915 = vmatmul.mubr.bf16.gmra.mxu0 %v1881
    %v1916 = vpop.f32.mrf.mxu0
    %v1917 = vadd.f32 %v1879, %v1916
    %v1918 = vpop.f32.mrf.mxu0
    %v1919 = vpop.f32.mrf.mxu0
    %v1920 = vpop.f32.mrf.mxu0
    %1921 = vdwg.mxu0
    %v1922 = vadd.f32 %v1917, %v647
    %v1923 = vxor.u32 %v1922, 2147483648
    %v1924 = vmul.f32 %v1923, 1.442695
    %v1925 = vpow.pop %v1924
    %v1926 = vadd.f32 %v1925, 1.0
    %v1927 = vrcp.pop %v1926
    %v1928 = vmul.f32 1.0, %v1927
    %v1929 = vtanh.pop %v1922
    %v1930 = vmul.f32 %v1928, %v1740
    %1932 = vrot.lane.b32.xlu0 %v1929, 64
    %v1933 = vpop.permute.xlu0 %1932
    %v1935 = vmul.f32 %v1928, %v1933
    %1937 = vrot.lane.b32.xlu0 %v1935, 32
    %v1938 = vpop.permute.xlu0 %1937
    %v1940 = vadd.f32 %v1930, %v1938
    %v1941 = vtanh.pop %v1940
    %1943 = vrot.lane.b32.xlu0 %v1941, 64
    %v1944 = vpop.permute.xlu0 %1943
    %v1946 = vmul.f32 %v1928, %v1944
    %1948 = vrot.lane.b32.xlu0 %v1946, 32
    %v1949 = vpop.permute.xlu0 %1948
    %v1951 = vsel %vm677, %v1949, %v1940
    %v1952 = vsel %vm679, %v1951, 0.0
    %v1953 = vpack.c.bf16 %v1952, %v1952
    %1954 = vmatprep.subr.bf16.mxu0 0
    %1955 = vmatpush1.bf16.msra.mxu0 %v303
    %1956 = vmatprep.subr.bf16.mxu0 0
    %1957 = vmatpush1.bf16.msra.mxu0 %v302
    %1958 = vmatprep.subr.bf16.mxu0 0
    %1959 = vmatpush1.bf16.msra.mxu0 %v301
    %1960 = vmatprep.subr.bf16.mxu0 0
    %1961 = vmatpush1.bf16.msra.mxu0 %v300
    %1962 = vmatprep.subr.bf16.mxu0 0
    %1963 = vmatpush1.bf16.msra.mxu0 %v299
    %1964 = vmatprep.subr.bf16.mxu0 0
    %1965 = vmatpush1.bf16.msra.mxu0 %v298
    %1966 = vmatprep.subr.bf16.mxu0 0
    %1967 = vmatpush1.bf16.msra.mxu0 %v297
    %1968 = vmatprep.subr.bf16.mxu0 0
    %1969 = vmatpush1.bf16.msra.mxu0 %v296
    %1970 = vmatprep.subr.bf16.mxu0 0
    %1971 = vmatpush2.bf16.msra.mxu0 0
    %1972 = vmatprep.subr.bf16.mxu0 0
    %1973 = vmatpush2.bf16.msra.mxu0 0
    %1974 = vmatprep.subr.bf16.mxu0 0
    %1975 = vmatpush2.bf16.msra.mxu0 0
    %1976 = vmatprep.subr.bf16.mxu0 0
    %1977 = vmatpush2.bf16.msra.mxu0 0
    %1978 = vmatprep.subr.bf16.mxu0 0
    %1979 = vmatpush2.bf16.msra.mxu0 0
    %1980 = vmatprep.subr.bf16.mxu0 0
    %1981 = vmatpush2.bf16.msra.mxu0 0
    %1982 = vmatprep.subr.bf16.mxu0 0
    %1983 = vmatpush2.bf16.msra.mxu0 0
    %1984 = vmatprep.subr.bf16.mxu0 0
    %1985 = vmatpush2.bf16.msra.mxu0 0
    %1986 = vmatprep.mubr.bf16.mxu0 0
    %1987 = vmatmul.mubr.bf16.gmra.mxu0 %v1953
    %v1988 = vpop.f32.mrf.mxu0
    %v1989 = vadd.f32 %v259, %v1988
    %v1990 = vpop.f32.mrf.mxu0
    %v1991 = vpop.f32.mrf.mxu0
    %v1992 = vpop.f32.mrf.mxu0
    %1993 = vdwg.mxu0
    %v1994 = vtanh.pop %v1989
    %v1995 = vpack.c.bf16 %v1994, %v1994
    %1996 = vmatprep.subr.bf16.mxu0 0
    %1997 = vmatpush1.bf16.msra.mxu0 %v397
    %1998 = vmatprep.subr.bf16.mxu0 0
    %1999 = vmatpush1.bf16.msra.mxu0 %v396
    %2000 = vmatprep.subr.bf16.mxu0 0
    %2001 = vmatpush1.bf16.msra.mxu0 %v395
    %2002 = vmatprep.subr.bf16.mxu0 0
    %2003 = vmatpush1.bf16.msra.mxu0 %v394
    %2004 = vmatprep.subr.bf16.mxu0 0
    %2005 = vmatpush1.bf16.msra.mxu0 %v393
    %2006 = vmatprep.subr.bf16.mxu0 0
    %2007 = vmatpush1.bf16.msra.mxu0 %v392
    %2008 = vmatprep.subr.bf16.mxu0 0
    %2009 = vmatpush1.bf16.msra.mxu0 %v391
    %2010 = vmatprep.subr.bf16.mxu0 0
    %2011 = vmatpush1.bf16.msra.mxu0 %v390
    %2012 = vmatprep.subr.bf16.mxu0 0
    %2013 = vmatpush2.bf16.msra.mxu0 0
    %2014 = vmatprep.subr.bf16.mxu0 0
    %2015 = vmatpush2.bf16.msra.mxu0 0
    %2016 = vmatprep.subr.bf16.mxu0 0
    %2017 = vmatpush2.bf16.msra.mxu0 0
    %2018 = vmatprep.subr.bf16.mxu0 0
    %2019 = vmatpush2.bf16.msra.mxu0 0
    %2020 = vmatprep.subr.bf16.mxu0 0
    %2021 = vmatpush2.bf16.msra.mxu0 0
    %2022 = vmatprep.subr.bf16.mxu0 0
    %2023 = vmatpush2.bf16.msra.mxu0 0
    %2024 = vmatprep.subr.bf16.mxu0 0
    %2025 = vmatpush2.bf16.msra.mxu0 0
    %2026 = vmatprep.subr.bf16.mxu0 0
    %2027 = vmatpush2.bf16.msra.mxu0 0
    %2028 = vmatprep.mubr.bf16.mxu0 0
    %2029 = vmatmul.mubr.bf16.gmra.mxu0 %v1995
    %v2030 = vpop.f32.mrf.mxu0
    %v2031 = vadd.f32 %v357, %v2030
    %v2032 = vpop.f32.mrf.mxu0
    %v2033 = vpop.f32.mrf.mxu0
    %v2034 = vpop.f32.mrf.mxu0
    %2035 = vdwg.mxu0
    %2036 = vmax.xlane.f32.xlu0 %v2031
    %v2037 = vpop.xlane.xlu0 %2036
    %v2038 = vsub.f32 %v2031, %v2037
    %v2039 = vmul.f32 %v2038, 1.442695
    %v2040 = vpow.pop %v2039
    %2041 = vadd.xlane.f32.xlu0 %v2040
    %v2042 = vpop.xlane.xlu0 %2041
    %v2043 = vrcp.pop %v2042
    %v2044 = vmul.f32 %v2040, %v2043
    %v2045 = vmul.f32 %v2044, %v169
    %v2046 = vpack.c.bf16 %v2045, %v2045
    %2047 = vmatprep.subr.bf16.mxu0 0
    %2048 = vmatpush1.bf16.msra.mxu0 %v506
    %2049 = vmatprep.subr.bf16.mxu0 0
    %2050 = vmatpush1.bf16.msra.mxu0 %v505
    %2051 = vmatprep.subr.bf16.mxu0 0
    %2052 = vmatpush1.bf16.msra.mxu0 %v504
    %2053 = vmatprep.subr.bf16.mxu0 0
    %2054 = vmatpush1.bf16.msra.mxu0 %v503
    %2055 = vmatprep.subr.bf16.mxu0 0
    %2056 = vmatpush1.bf16.msra.mxu0 %v502
    %2057 = vmatprep.subr.bf16.mxu0 0
    %2058 = vmatpush1.bf16.msra.mxu0 %v501
    %2059 = vmatprep.subr.bf16.mxu0 0
    %2060 = vmatpush1.bf16.msra.mxu0 %v500
    %2061 = vmatprep.subr.bf16.mxu0 0
    %2062 = vmatpush1.bf16.msra.mxu0 %v499
    %2063 = vmatprep.subr.bf16.mxu0 0
    %2064 = vmatpush2.bf16.msra.mxu0 0
    %2065 = vmatprep.subr.bf16.mxu0 0
    %2066 = vmatpush2.bf16.msra.mxu0 0
    %2067 = vmatprep.subr.bf16.mxu0 0
    %2068 = vmatpush2.bf16.msra.mxu0 0
    %2069 = vmatprep.subr.bf16.mxu0 0
    %2070 = vmatpush2.bf16.msra.mxu0 0
    %2071 = vmatprep.subr.bf16.mxu0 0
    %2072 = vmatpush2.bf16.msra.mxu0 0
    %2073 = vmatprep.subr.bf16.mxu0 0
    %2074 = vmatpush2.bf16.msra.mxu0 0
    %2075 = vmatprep.subr.bf16.mxu0 0
    %2076 = vmatpush2.bf16.msra.mxu0 0
    %2077 = vmatprep.subr.bf16.mxu0 0
    %2078 = vmatpush2.bf16.msra.mxu0 0
    %2079 = vmatprep.mubr.bf16.mxu0 0
    %2080 = vmatmul.mubr.bf16.gmra.mxu0 %v2046
    %v2081 = vpop.f32.mrf.mxu0
    %v2082 = vadd.f32 0.0, %v2081
    %v2083 = vpop.f32.mrf.mxu0
    %v2084 = vpop.f32.mrf.mxu0
    %v2085 = vpop.f32.mrf.mxu0
    %2086 = vdwg.mxu0
    %v2087 = vadd.f32 %v1952, %v2082
    %v2088 = vpack.c.bf16 %v2087, %v2087
    %v2089 = vlaneseq
    %v2090 = vshrl.u32 %v2089, 7
    %v2091 = vsub.s32 0, %v2090
    %v2092 = vrot.slane %v168, %v2091
    %v2109 = vunpack.c.l.b16 %v148
    %v2110 = vunpack.c.l.b16 %v149
    %v2111 = vunpack.c.l.b16 %v150
    %v2112 = vunpack.c.l.b16 %v151
    %v2113 = vunpack.c.l.b16 %v152
    %v2114 = vunpack.c.l.b16 %v153
    %v2115 = vunpack.c.l.b16 %v154
    %v2116 = vunpack.c.l.b16 %v155
    %v2117 = vunpack.c.l.b16 %v156
    %v2118 = vunpack.c.l.b16 %v157
    %v2119 = vunpack.c.l.b16 %v158
    %v2120 = vunpack.c.l.b16 %v159
    %v2121 = vunpack.c.l.b16 %v160
    %v2122 = vunpack.c.l.b16 %v161
    %v2123 = vunpack.c.l.b16 %v162
    %v2124 = vunpack.c.l.b16 %v163
    %v2125 = vpack.c.b16 %v2110, %v2109
    %v2126 = vpack.c.b16 %v2112, %v2111
    %v2127 = vpack.c.b16 %v2114, %v2113
    %v2128 = vpack.c.b16 %v2116, %v2115
    %v2129 = vpack.c.b16 %v2118, %v2117
    %v2130 = vpack.c.b16 %v2120, %v2119
    %v2131 = vpack.c.b16 %v2122, %v2121
    %v2132 = vpack.c.b16 %v2124, %v2123
    %2141 = vmatprep.subr.bf16.mxu0 0
    %2142 = vmatpush1.bf16.msra.mxu0 %v2132
    %2143 = vmatprep.subr.bf16.mxu0 0
    %2144 = vmatpush1.bf16.msra.mxu0 %v2131
    %2145 = vmatprep.subr.bf16.mxu0 0
    %2146 = vmatpush1.bf16.msra.mxu0 %v2130
    %2147 = vmatprep.subr.bf16.mxu0 0
    %2148 = vmatpush1.bf16.msra.mxu0 %v2129
    %2149 = vmatprep.subr.bf16.mxu0 0
    %2150 = vmatpush1.bf16.msra.mxu0 %v2128
    %2151 = vmatprep.subr.bf16.mxu0 0
    %2152 = vmatpush1.bf16.msra.mxu0 %v2127
    %2153 = vmatprep.subr.bf16.mxu0 0
    %2154 = vmatpush1.bf16.msra.mxu0 %v2126
    %2155 = vmatprep.subr.bf16.mxu0 0
    %2156 = vmatpush1.bf16.msra.mxu0 %v2125
    %2157 = vmatprep.subr.bf16.mxu0 0
    %2158 = vmatpush2.bf16.msra.mxu0 0
    %2159 = vmatprep.subr.bf16.mxu0 0
    %2160 = vmatpush2.bf16.msra.mxu0 0
    %2161 = vmatprep.subr.bf16.mxu0 0
    %2162 = vmatpush2.bf16.msra.mxu0 0
    %2163 = vmatprep.subr.bf16.mxu0 0
    %2164 = vmatpush2.bf16.msra.mxu0 0
    %2165 = vmatprep.subr.bf16.mxu0 0
    %2166 = vmatpush2.bf16.msra.mxu0 0
    %2167 = vmatprep.subr.bf16.mxu0 0
    %2168 = vmatpush2.bf16.msra.mxu0 0
    %2169 = vmatprep.subr.bf16.mxu0 0
    %2170 = vmatpush2.bf16.msra.mxu0 0
    %2171 = vmatprep.subr.bf16.mxu0 0
    %2172 = vmatpush2.bf16.msra.mxu0 0
    %2173 = vmatprep.mubr.bf16.mxu0 0
    %2174 = vmatmul.mubr.bf16.gmra.mxu0 %v2088
    %v2175 = vpop.f32.mrf.mxu0
    %v2176 = vadd.f32 %v2092, %v2175
    %v2177 = vpop.f32.mrf.mxu0
    %v2178 = vpop.f32.mrf.mxu0
    %v2179 = vpop.f32.mrf.mxu0
    %2180 = vdwg.mxu0
    %2181 = vst [vmem:[#allocation10] sm:$0xff] %v2176
    // Predicated region
    $region34: #{tpu_custom_call.1} parent=1 // pred_check
      _
    $region35: #{tpu_custom_call.1} parent=1 // pred_check_branch
      %2183 = sbr.rel (0) target = $region37
    $region36: #{tpu_custom_call.1} parent=1 // pred_region
      %s2185 = ssub.s32 128, 128
      %2186 = vsyncadd [#allocation4], %s2185
      %s2188 = sshll.u32 [#allocation10], 4
      %s2189 = int_to_ptr.vmem [resolvable:$true] %s2188
      %2191 = dma.vmem_to_hbm [thread:$0]  %s2189, 128, %s4, [#allocation4]
    $region37: #{tpu_custom_call.1} parent=1 // pred_fallthru
      _
    // Predicated region
    $region38: #{tpu_custom_call.1} parent=1 // pred_check
      _
    $region39: #{tpu_custom_call.1} parent=1 // pred_check_branch
      %2193 = sbr.rel (0) target = $region41
    $region40: #{tpu_custom_call.1} parent=1 // pred_region
      %2194 = dma.done [#allocation4], 128
    $region41: #{tpu_custom_call.1} parent=1 // pred_fallthru
      _
    %2195 = vsyncpa [#allocation3], 1
    %2196 = vsyncpa [#allocation6], 1
    %2197 = vsyncpa [#allocation9], 1
    %2198 = vsyncpa [#allocation4], 1

</llo_original>
